<compile_context>
chip_gen: v7x
topology: tpu7x:2x2x1
jax: 0.10.0
libtpu: 0.0.40
codegen_flags: <defaults>
</compile_context>

<pallas_src>
import math
import functools

import jax
import jax.numpy as jnp
from jax.experimental import pallas as pl
from jax.experimental.pallas import tpu as pltpu

# ----------------------------- tiny BERT config -----------------------------
B = 2          # batch
S = 8          # sequence length
H = 32         # hidden size
NH = 2         # attention heads
DH = H // NH   # head dim
I = 64         # intermediate (FFN) size
L = 2          # number of encoder layers
VOCAB = 128
MAXPOS = 16
LN_EPS = 1e-12


# ------------------------------ kernel helpers -------------------------------
def _layernorm(x, g, b):
    mu = jnp.mean(x, axis=-1, keepdims=True)
    var = jnp.mean((x - mu) ** 2, axis=-1, keepdims=True)
    return (x - mu) * jax.lax.rsqrt(var + LN_EPS) * g + b


def _erf(x):
    # Abramowitz & Stegun 7.1.26, |abs err| < 1.5e-7.  Built only from ops with
    # guaranteed Mosaic lowerings (abs, exp, mul/add, where).
    a1, a2, a3, a4, a5 = (0.254829592, -0.284496736, 1.421413741,
                          -1.453152027, 1.061405429)
    p = 0.3275911
    ax = jnp.abs(x)
    t = 1.0 / (1.0 + p * ax)
    poly = ((((a5 * t + a4) * t + a3) * t + a2) * t + a1) * t
    y = 1.0 - poly * jnp.exp(-(ax * ax))
    return jnp.where(x >= 0.0, y, -y)


def _gelu_exact(x):
    # HF BERT default GELU (erf form), fp32.
    return 0.5 * x * (1.0 + _erf(x * 0.7071067811865476))


# ------------------------------ fused BERT kernel -----------------------------
def bert_fused_kernel(x_ref, bias_ref, eg_ref, eb_ref,
                      wqkv_ref, bqkv_ref, wo_ref, bo_ref,
                      ln1g_ref, ln1b_ref, w1_ref, b1_ref, w2_ref, b2_ref,
                      ln2g_ref, ln2b_ref, cls_ref):
    # x_ref   : (B*S, H)  fp32 embedding sum (word + pos + type)
    # bias_ref: (B, 1, S) fp32 additive attention-mask bias ((1-mask)*-1e4)
    # weights : stacked with a leading L axis; big matmul weights are bf16.
    # cls_ref : (B, H)    fp32 [CLS] hidden state (only HBM write).
    x = _layernorm(x_ref[...], eg_ref[...], eb_ref[...])          # (B*S, H) fp32
    key_bias = bias_ref[...]                                       # (B, 1, S)
    scale = 1.0 / math.sqrt(DH)

    for l in range(L):  # L=2, unrolled at trace time; activation stays resident
        # ---- fused QKV projection: one (B*S,H) @ (H,3H) matmul -------------
        xb = x.astype(jnp.bfloat16)
        qkv = jnp.dot(xb, wqkv_ref[l],
                      preferred_element_type=jnp.float32) + bqkv_ref[l]  # (B*S, 3H)
        q = qkv[:, 0 * H:1 * H]
        k = qkv[:, 1 * H:2 * H]
        v = qkv[:, 2 * H:3 * H]

        wo_l = wo_ref[l]                                           # (H, H) bf16
        attn = jnp.zeros((B * S, H), jnp.float32)
        for h in range(NH):
            sl = slice(h * DH, (h + 1) * DH)
            qh = q[:, sl].reshape(B, S, DH).astype(jnp.bfloat16)
            kh = k[:, sl].reshape(B, S, DH).astype(jnp.bfloat16)
            vh = v[:, sl].reshape(B, S, DH).astype(jnp.bfloat16)
            # batched over B: (B, S, S) scores
            sc = jnp.einsum("bqd,bkd->bqk", qh, kh,
                            preferred_element_type=jnp.float32) * scale
            sc = sc + key_bias                                     # mask bias
            # fp32 softmax; denominator reciprocal on the EUP slot
            sc = sc - jnp.max(sc, axis=-1, keepdims=True)
            p = jnp.exp(sc)
            p = p * pl.reciprocal(jnp.sum(p, axis=-1, keepdims=True), approx=True)
            ctx = jnp.einsum("bqk,bkd->bqd", p.astype(jnp.bfloat16), vh,
                             preferred_element_type=jnp.float32)    # (B, S, DH)
            # concat-over-heads @ Wo  ==  sum_h ctx_h @ Wo[h*DH:(h+1)*DH, :]
            attn = attn + jnp.dot(
                ctx.reshape(B * S, DH).astype(jnp.bfloat16), wo_l[sl, :],
                preferred_element_type=jnp.float32)
        attn = attn + bo_ref[l]

        h1 = _layernorm(x + attn, ln1g_ref[l], ln1b_ref[l])        # fp32

        # ---- feed-forward ---------------------------------------------------
        ff = jnp.dot(h1.astype(jnp.bfloat16), w1_ref[l],
                     preferred_element_type=jnp.float32) + b1_ref[l]
        ff = _gelu_exact(ff)                                       # exact erf GELU
        ff = jnp.dot(ff.astype(jnp.bfloat16), w2_ref[l],
                     preferred_element_type=jnp.float32) + b2_ref[l]

        x = _layernorm(h1 + ff, ln2g_ref[l], ln2b_ref[l])

    # Only the [CLS] rows (row b*S of the flattened activation) leave the kernel.
    for b in range(B):
        cls_ref[b:b + 1, :] = x[b * S:b * S + 1, :]


# ------------------------------ pallas wrapper --------------------------------
def _full_spec(shape):
    nd = len(shape)
    return pl.BlockSpec(shape, lambda i, _nd=nd: (0,) * _nd)


def bert_forward_pallas(kp, x_flat, key_bias):
    args = (x_flat, key_bias, kp["emb_ln_g"], kp["emb_ln_b"],
            kp["wqkv"], kp["bqkv"], kp["wo"], kp["bo"],
            kp["ln1_g"], kp["ln1_b"], kp["w1"], kp["b1"],
            kp["w2"], kp["b2"], kp["ln2_g"], kp["ln2_b"])
    in_specs = [_full_spec(a.shape) for a in args]
    return pl.pallas_call(
        bert_fused_kernel,
        out_shape=jax.ShapeDtypeStruct((B, H), jnp.float32),
        grid_spec=pltpu.PrefetchScalarGridSpec(
            num_scalar_prefetch=0,
            grid=(1,),                         # single step: whole problem in VMEM
            in_specs=in_specs,
            out_specs=_full_spec((B, H)),
        ),
        compiler_params=pltpu.CompilerParams(
            dimension_semantics=("arbitrary",)),
    )(*args)


# ------------------------------ parameter setup ------------------------------
def make_bert_params(key):
    """Deterministic synthetic BERT parameters (fp32 masters, normal(0, 0.02))."""
    ks = iter(jax.random.split(key, 64))
    nrm = lambda shape: 0.02 * jax.random.normal(next(ks), shape, jnp.float32)
    params = {
        "word_emb": nrm((VOCAB, H)),
        "pos_emb": nrm((MAXPOS, H)),
        "type_emb": nrm((2, H)),
        "emb_ln_g": jnp.ones((1, H), jnp.float32),
        "emb_ln_b": jnp.zeros((1, H), jnp.float32),
        "layers": [],
    }
    for _ in range(L):
        params["layers"].append({
            "wq": nrm((H, H)), "bq": nrm((1, H)),
            "wk": nrm((H, H)), "bk": nrm((1, H)),
            "wv": nrm((H, H)), "bv": nrm((1, H)),
            "wo": nrm((H, H)), "bo": nrm((1, H)),
            "ln1_g": jnp.ones((1, H), jnp.float32),
            "ln1_b": jnp.zeros((1, H), jnp.float32),
            "w1": nrm((H, I)), "b1": nrm((1, I)),
            "w2": nrm((I, H)), "b2": nrm((1, H)),
            "ln2_g": jnp.ones((1, H), jnp.float32),
            "ln2_b": jnp.zeros((1, H), jnp.float32),
        })
    return params


def prepare_kernel_params(params):
    """Stack per-layer params on a leading L axis; cast matmul weights to bf16."""
    ls = params["layers"]
    stack = lambda k: jnp.stack([lp[k] for lp in ls])
    return {
        "emb_ln_g": params["emb_ln_g"],
        "emb_ln_b": params["emb_ln_b"],
        "wqkv": jnp.stack(
            [jnp.concatenate([lp["wq"], lp["wk"], lp["wv"]], axis=1) for lp in ls]
        ).astype(jnp.bfloat16),                                    # (L, H, 3H)
        "bqkv": jnp.stack(
            [jnp.concatenate([lp["bq"], lp["bk"], lp["bv"]], axis=1) for lp in ls]
        ),                                                         # (L, 1, 3H)
        "wo": stack("wo").astype(jnp.bfloat16), "bo": stack("bo"),
        "ln1_g": stack("ln1_g"), "ln1_b": stack("ln1_b"),
        "w1": stack("w1").astype(jnp.bfloat16), "b1": stack("b1"),
        "w2": stack("w2").astype(jnp.bfloat16), "b2": stack("b2"),
        "ln2_g": stack("ln2_g"), "ln2_b": stack("ln2_b"),
    }


# --------------------------------- model -------------------------------------
def bert_encode(params, kparams, input_ids, attention_mask):
    # Embedding gather (plain-JAX glue): word + position + token_type(=0).
    x = (params["word_emb"][input_ids]
         + params["pos_emb"][None, :S, :]
         + params["type_emb"][0][None, None, :])                   # (B, S, H) fp32
    x_flat = x.reshape(B * S, H)
    key_bias = ((1.0 - attention_mask.astype(jnp.float32)) * -10000.0
                ).reshape(B, 1, S)                                  # HF extended mask
    return bert_forward_pallas(kparams, x_flat, key_bias)           # (B, H) [CLS]


bert_encode_jit = jax.jit(bert_encode)


class BertDotDualSingleFull:
    """JAX/Pallas equivalent of BertDot_DualSingle_Full.forward (inference)."""
    # TODO(synk): checkpoint loading / adapter save-load are host-side I/O with
    # no kernel equivalent; parameters are synthetic deterministic inits here.

    def __init__(self, key):
        kq, kd = jax.random.split(key)
        self.paramsQ = make_bert_params(kq)   # bertQ
        self.paramsD = make_bert_params(kd)   # bertD
        self.kparamsQ = prepare_kernel_params(self.paramsQ)
        self.kparamsD = prepare_kernel_params(self.paramsD)

    def query_emb(self, input_ids, attention_mask):
        return bert_encode_jit(self.paramsQ, self.kparamsQ,
                               input_ids, attention_mask)            # first(outputs1)

    def body_emb(self, input_ids, attention_mask):
        return bert_encode_jit(self.paramsD, self.kparamsD,
                               input_ids, attention_mask)

    def __call__(self, input_ids, attention_mask, is_query):
        if is_query:
            return self.query_emb(input_ids, attention_mask)
        return self.body_emb(input_ids, attention_mask)


# ----------------------------- pure-JAX reference ----------------------------
def _ref_encode(params, input_ids, attention_mask):
    x = (params["word_emb"][input_ids]
         + params["pos_emb"][None, :S, :]
         + params["type_emb"][0][None, None, :])

    def ln(x, g, b):
        mu = jnp.mean(x, -1, keepdims=True)
        var = jnp.mean((x - mu) ** 2, -1, keepdims=True)
        return (x - mu) * jax.lax.rsqrt(var + LN_EPS) * g + b

    x = ln(x, params["emb_ln_g"], params["emb_ln_b"])
    mask = attention_mask.astype(jnp.float32)
    key_bias = (1.0 - mask)[:, None, None, :] * -10000.0             # (B,1,1,S)
    for lp in params["layers"]:
        q = (x @ lp["wq"] + lp["bq"]).reshape(B, S, NH, DH).transpose(0, 2, 1, 3)
        k = (x @ lp["wk"] + lp["bk"]).reshape(B, S, NH, DH).transpose(0, 2, 1, 3)
        v = (x @ lp["wv"] + lp["bv"]).reshape(B, S, NH, DH).transpose(0, 2, 1, 3)
        sc = jnp.einsum("bnqd,bnkd->bnqk", q, k) / math.sqrt(DH) + key_bias
        p = jax.nn.softmax(sc, -1)
        ctx = jnp.einsum("bnqk,bnkd->bnqd", p, v)
        ctx = ctx.transpose(0, 2, 1, 3).reshape(B, S, H)
        attn = ctx @ lp["wo"] + lp["bo"]
        h1 = ln(x + attn, lp["ln1_g"], lp["ln1_b"])
        ff = jax.nn.gelu(h1 @ lp["w1"] + lp["b1"], approximate=False)  # exact erf
        ff = ff @ lp["w2"] + lp["b2"]
        x = ln(h1 + ff, lp["ln2_g"], lp["ln2_b"])
    return x[:, 0]


# ----------------------------------- main ------------------------------------
if __name__ == "__main__":
    root = jax.random.PRNGKey(0)
    k_model, k_ids, k_mask = jax.random.split(root, 3)

    model = BertDotDualSingleFull(k_model)

    input_ids = jax.random.randint(k_ids, (B, S), 0, VOCAB, dtype=jnp.int32)
    # attention mask: first token always attended, rest random {0,1}
    attention_mask = jnp.concatenate(
        [jnp.ones((B, 1), jnp.int32),
         jax.random.randint(k_mask, (B, S - 1), 0, 2, dtype=jnp.int32)], axis=1)

    q_emb = jax.block_until_ready(model(input_ids, attention_mask, True))
    d_emb = jax.block_until_ready(model(input_ids, attention_mask, False))

    # sanity check against the fp32 plain-JAX reference (kernel uses bf16 matmuls)
    q_ref = _ref_encode(model.paramsQ, input_ids, attention_mask)
    d_ref = _ref_encode(model.paramsD, input_ids, attention_mask)
    assert q_emb.shape == (B, H) and d_emb.shape == (B, H)
    assert jnp.allclose(q_emb, q_ref, atol=2e-3, rtol=2e-3)
    assert jnp.allclose(d_emb, d_ref, atol=2e-3, rtol=2e-3)

    print("KERNEL_OK")
</pallas_src>

<mosaic_0001>
module attributes {stable_mosaic.version = 11 : i64} {
  func.func @bert_fused_kernel(%arg0: i32, %arg1: memref<16x32xf32, #tpu.memory_space<vmem>>, %arg2: memref<2x1x8xf32, #tpu.memory_space<vmem>>, %arg3: memref<1x32xf32, #tpu.memory_space<vmem>>, %arg4: memref<1x32xf32, #tpu.memory_space<vmem>>, %arg5: memref<2x32x96xbf16, #tpu.memory_space<vmem>>, %arg6: memref<2x1x96xf32, #tpu.memory_space<vmem>>, %arg7: memref<2x32x32xbf16, #tpu.memory_space<vmem>>, %arg8: memref<2x1x32xf32, #tpu.memory_space<vmem>>, %arg9: memref<2x1x32xf32, #tpu.memory_space<vmem>>, %arg10: memref<2x1x32xf32, #tpu.memory_space<vmem>>, %arg11: memref<2x32x64xbf16, #tpu.memory_space<vmem>>, %arg12: memref<2x1x64xf32, #tpu.memory_space<vmem>>, %arg13: memref<2x64x32xbf16, #tpu.memory_space<vmem>>, %arg14: memref<2x1x32xf32, #tpu.memory_space<vmem>>, %arg15: memref<2x1x32xf32, #tpu.memory_space<vmem>>, %arg16: memref<2x1x32xf32, #tpu.memory_space<vmem>>, %arg17: memref<2x32xf32, #tpu.memory_space<vmem>>) attributes {dimension_semantics = [#tpu.dimension_semantics<arbitrary>], iteration_bounds = array<i64: 1>, scalar_prefetch = 0 : i64, scratch_operands = 0 : i64, tpu.core_type = #tpu.core_type<tc>, window_params = [{pipeline_mode = #tpu.pipeline_mode<synchronous>, transform_indices = @transform_0, window_bounds = array<i64: 16, 32>}, {pipeline_mode = #tpu.pipeline_mode<synchronous>, transform_indices = @transform_1, window_bounds = array<i64: 2, 1, 8>}, {pipeline_mode = #tpu.pipeline_mode<synchronous>, transform_indices = @transform_2, window_bounds = array<i64: 1, 32>}, {pipeline_mode = #tpu.pipeline_mode<synchronous>, transform_indices = @transform_3, window_bounds = array<i64: 1, 32>}, {pipeline_mode = #tpu.pipeline_mode<synchronous>, transform_indices = @transform_4, window_bounds = array<i64: 2, 32, 96>}, {pipeline_mode = #tpu.pipeline_mode<synchronous>, transform_indices = @transform_5, window_bounds = array<i64: 2, 1, 96>}, {pipeline_mode = #tpu.pipeline_mode<synchronous>, transform_indices = @transform_6, window_bounds = array<i64: 2, 32, 32>}, {pipeline_mode = #tpu.pipeline_mode<synchronous>, transform_indices = @transform_7, window_bounds = array<i64: 2, 1, 32>}, {pipeline_mode = #tpu.pipeline_mode<synchronous>, transform_indices = @transform_8, window_bounds = array<i64: 2, 1, 32>}, {pipeline_mode = #tpu.pipeline_mode<synchronous>, transform_indices = @transform_9, window_bounds = array<i64: 2, 1, 32>}, {pipeline_mode = #tpu.pipeline_mode<synchronous>, transform_indices = @transform_10, window_bounds = array<i64: 2, 32, 64>}, {pipeline_mode = #tpu.pipeline_mode<synchronous>, transform_indices = @transform_11, window_bounds = array<i64: 2, 1, 64>}, {pipeline_mode = #tpu.pipeline_mode<synchronous>, transform_indices = @transform_12, window_bounds = array<i64: 2, 64, 32>}, {pipeline_mode = #tpu.pipeline_mode<synchronous>, transform_indices = @transform_13, window_bounds = array<i64: 2, 1, 32>}, {pipeline_mode = #tpu.pipeline_mode<synchronous>, transform_indices = @transform_14, window_bounds = array<i64: 2, 1, 32>}, {pipeline_mode = #tpu.pipeline_mode<synchronous>, transform_indices = @transform_15, window_bounds = array<i64: 2, 1, 32>}, {pipeline_mode = #tpu.pipeline_mode<synchronous>, transform_indices = @transform_16, window_bounds = array<i64: 2, 32>}]} {
    %c0 = arith.constant 0 : index
    %c0_0 = arith.constant 0 : index
    %0 = vector.load %arg1[%c0, %c0_0] : memref<16x32xf32, #tpu.memory_space<vmem>>, vector<16x32xf32>
    %c0_1 = arith.constant 0 : index
    %c0_2 = arith.constant 0 : index
    %1 = vector.load %arg3[%c0_1, %c0_2] : memref<1x32xf32, #tpu.memory_space<vmem>>, vector<1x32xf32>
    %c0_3 = arith.constant 0 : index
    %c0_4 = arith.constant 0 : index
    %2 = vector.load %arg4[%c0_3, %c0_4] : memref<1x32xf32, #tpu.memory_space<vmem>>, vector<1x32xf32>
    %cst = arith.constant dense<0.000000e+00> : vector<16xf32>
    %3 = vector.multi_reduction <add>, %0, %cst [1] : vector<16x32xf32> to vector<16xf32>
    %4 = vector.shape_cast %3 : vector<16xf32> to vector<16x1xf32>
    %cst_5 = arith.constant 3.200000e+01 : f32
    %5 = vector.broadcast %cst_5 : f32 to vector<16x1xf32>
    %6 = arith.divf %4, %5 : vector<16x1xf32>
    %7 = vector.broadcast %6 : vector<16x1xf32> to vector<16x32xf32>
    %8 = arith.subf %0, %7 : vector<16x32xf32>
    %9 = arith.mulf %8, %8 : vector<16x32xf32>
    %cst_6 = arith.constant dense<0.000000e+00> : vector<16xf32>
    %10 = vector.multi_reduction <add>, %9, %cst_6 [1] : vector<16x32xf32> to vector<16xf32>
    %11 = vector.shape_cast %10 : vector<16xf32> to vector<16x1xf32>
    %cst_7 = arith.constant 3.200000e+01 : f32
    %12 = vector.broadcast %cst_7 : f32 to vector<16x1xf32>
    %13 = arith.divf %11, %12 : vector<16x1xf32>
    %14 = vector.broadcast %6 : vector<16x1xf32> to vector<16x32xf32>
    %15 = arith.subf %0, %14 : vector<16x32xf32>
    %cst_8 = arith.constant 9.99999996E-13 : f32
    %16 = vector.broadcast %cst_8 : f32 to vector<16x1xf32>
    %17 = arith.addf %13, %16 : vector<16x1xf32>
    %18 = math.rsqrt %17 : vector<16x1xf32>
    %19 = vector.broadcast %18 : vector<16x1xf32> to vector<16x32xf32>
    %20 = arith.mulf %15, %19 : vector<16x32xf32>
    %21 = vector.broadcast %1 : vector<1x32xf32> to vector<16x32xf32>
    %22 = arith.mulf %20, %21 : vector<16x32xf32>
    %23 = vector.broadcast %2 : vector<1x32xf32> to vector<16x32xf32>
    %24 = arith.addf %22, %23 : vector<16x32xf32>
    %c0_9 = arith.constant 0 : index
    %c0_10 = arith.constant 0 : index
    %c0_11 = arith.constant 0 : index
    %25 = vector.load %arg2[%c0_9, %c0_10, %c0_11] : memref<2x1x8xf32, #tpu.memory_space<vmem>>, vector<2x1x8xf32>
    %26 = arith.truncf %24 : vector<16x32xf32> to vector<16x32xbf16>
    %c0_12 = arith.constant 0 : index
    %c0_13 = arith.constant 0 : index
    %c0_14 = arith.constant 0 : index
    %27 = vector.load %arg5[%c0_12, %c0_13, %c0_14] : memref<2x32x96xbf16, #tpu.memory_space<vmem>>, vector<1x32x96xbf16>
    %28 = vector.shape_cast %27 : vector<1x32x96xbf16> to vector<32x96xbf16>
    %cst_15 = arith.constant dense<0.000000e+00> : vector<16x96xf32>
    %29 = tpu.matmul %26, %28, %cst_15 {dimension_numbers = #tpu.dot_dimension_numbers<[1], [0], [0], [1], [0, 0, 1, 1], [], []>} : vector<16x32xbf16>, vector<32x96xbf16>, vector<16x96xf32> -> vector<16x96xf32>
    %c0_16 = arith.constant 0 : index
    %c0_17 = arith.constant 0 : index
    %c0_18 = arith.constant 0 : index
    %30 = vector.load %arg6[%c0_16, %c0_17, %c0_18] : memref<2x1x96xf32, #tpu.memory_space<vmem>>, vector<1x1x96xf32>
    %31 = vector.shape_cast %30 : vector<1x1x96xf32> to vector<1x96xf32>
    %32 = vector.broadcast %31 : vector<1x96xf32> to vector<16x96xf32>
    %33 = arith.addf %29, %32 : vector<16x96xf32>
    %34 = vector.extract_strided_slice %33 {offsets = [0, 0], sizes = [16, 32], strides = [1, 1]} : vector<16x96xf32> to vector<16x32xf32>
    %35 = vector.extract_strided_slice %33 {offsets = [0, 32], sizes = [16, 32], strides = [1, 1]} : vector<16x96xf32> to vector<16x32xf32>
    %36 = vector.extract_strided_slice %33 {offsets = [0, 64], sizes = [16, 32], strides = [1, 1]} : vector<16x96xf32> to vector<16x32xf32>
    %c0_19 = arith.constant 0 : index
    %c0_20 = arith.constant 0 : index
    %c0_21 = arith.constant 0 : index
    %37 = vector.load %arg7[%c0_19, %c0_20, %c0_21] : memref<2x32x32xbf16, #tpu.memory_space<vmem>>, vector<1x32x32xbf16>
    %38 = vector.shape_cast %37 : vector<1x32x32xbf16> to vector<32x32xbf16>
    %cst_22 = arith.constant 0.000000e+00 : f32
    %39 = vector.broadcast %cst_22 : f32 to vector<16x32xf32>
    %40 = vector.extract_strided_slice %34 {offsets = [0, 0], sizes = [16, 16], strides = [1, 1]} : vector<16x32xf32> to vector<16x16xf32>
    %41 = vector.shape_cast %40 : vector<16x16xf32> to vector<2x8x16xf32>
    %42 = arith.truncf %41 : vector<2x8x16xf32> to vector<2x8x16xbf16>
    %43 = vector.extract_strided_slice %35 {offsets = [0, 0], sizes = [16, 16], strides = [1, 1]} : vector<16x32xf32> to vector<16x16xf32>
    %44 = vector.shape_cast %43 : vector<16x16xf32> to vector<2x8x16xf32>
    %45 = arith.truncf %44 : vector<2x8x16xf32> to vector<2x8x16xbf16>
    %46 = vector.extract_strided_slice %36 {offsets = [0, 0], sizes = [16, 16], strides = [1, 1]} : vector<16x32xf32> to vector<16x16xf32>
    %47 = vector.shape_cast %46 : vector<16x16xf32> to vector<2x8x16xf32>
    %48 = arith.truncf %47 : vector<2x8x16xf32> to vector<2x8x16xbf16>
    "tpu.trace_start"() <{level = 10 : i32, message = "bqd,bkd->bqk"}> : () -> ()
    %cst_23 = arith.constant dense<0.000000e+00> : vector<2x8x8xf32>
    %49 = tpu.matmul %42, %45, %cst_23 {dimension_numbers = #tpu.dot_dimension_numbers<[2], [2], [1], [1], [0, 0, 0, 1, 1, 1], [0], [0]>} : vector<2x8x16xbf16>, vector<2x8x16xbf16>, vector<2x8x8xf32> -> vector<2x8x8xf32>
    "tpu.trace_stop"() : () -> ()
    %cst_24 = arith.constant 2.500000e-01 : f32
    %50 = vector.broadcast %cst_24 : f32 to vector<2x8x8xf32>
    %51 = arith.mulf %49, %50 : vector<2x8x8xf32>
    %52 = vector.broadcast %25 : vector<2x1x8xf32> to vector<2x8x8xf32>
    %53 = arith.addf %51, %52 : vector<2x8x8xf32>
    %cst_25 = arith.constant dense<0xFF800000> : vector<2x8xf32>
    %54 = vector.multi_reduction <maximumf>, %53, %cst_25 [2] : vector<2x8x8xf32> to vector<2x8xf32>
    %55 = vector.shape_cast %54 : vector<2x8xf32> to vector<2x8x1xf32>
    %56 = vector.broadcast %55 : vector<2x8x1xf32> to vector<2x8x8xf32>
    %57 = arith.subf %53, %56 : vector<2x8x8xf32>
    %58 = math.exp %57 : vector<2x8x8xf32>
    %cst_26 = arith.constant dense<0.000000e+00> : vector<2x8xf32>
    %59 = vector.multi_reduction <add>, %58, %cst_26 [2] : vector<2x8x8xf32> to vector<2x8xf32>
    %60 = vector.shape_cast %59 : vector<2x8xf32> to vector<2x8x1xf32>
    %61 = tpu.reciprocal %60 {approx = true} : vector<2x8x1xf32> -> vector<2x8x1xf32>
    %62 = vector.broadcast %61 : vector<2x8x1xf32> to vector<2x8x8xf32>
    %63 = arith.mulf %58, %62 : vector<2x8x8xf32>
    %64 = arith.truncf %63 : vector<2x8x8xf32> to vector<2x8x8xbf16>
    "tpu.trace_start"() <{level = 10 : i32, message = "bqk,bkd->bqd"}> : () -> ()
    %cst_27 = arith.constant dense<0.000000e+00> : vector<2x8x16xf32>
    %65 = tpu.matmul %64, %48, %cst_27 {dimension_numbers = #tpu.dot_dimension_numbers<[2], [1], [1], [2], [0, 0, 0, 1, 1, 2], [0], [0]>} : vector<2x8x8xbf16>, vector<2x8x16xbf16>, vector<2x8x16xf32> -> vector<2x8x16xf32>
    "tpu.trace_stop"() : () -> ()
    %66 = vector.shape_cast %65 : vector<2x8x16xf32> to vector<16x16xf32>
    %67 = arith.truncf %66 : vector<16x16xf32> to vector<16x16xbf16>
    %68 = vector.extract_strided_slice %38 {offsets = [0, 0], sizes = [16, 32], strides = [1, 1]} : vector<32x32xbf16> to vector<16x32xbf16>
    %cst_28 = arith.constant dense<0.000000e+00> : vector<16x32xf32>
    %69 = tpu.matmul %67, %68, %cst_28 {dimension_numbers = #tpu.dot_dimension_numbers<[1], [0], [0], [1], [0, 0, 1, 1], [], []>} : vector<16x16xbf16>, vector<16x32xbf16>, vector<16x32xf32> -> vector<16x32xf32>
    %70 = arith.addf %39, %69 : vector<16x32xf32>
    %71 = vector.extract_strided_slice %34 {offsets = [0, 16], sizes = [16, 16], strides = [1, 1]} : vector<16x32xf32> to vector<16x16xf32>
    %72 = vector.shape_cast %71 : vector<16x16xf32> to vector<2x8x16xf32>
    %73 = arith.truncf %72 : vector<2x8x16xf32> to vector<2x8x16xbf16>
    %74 = vector.extract_strided_slice %35 {offsets = [0, 16], sizes = [16, 16], strides = [1, 1]} : vector<16x32xf32> to vector<16x16xf32>
    %75 = vector.shape_cast %74 : vector<16x16xf32> to vector<2x8x16xf32>
    %76 = arith.truncf %75 : vector<2x8x16xf32> to vector<2x8x16xbf16>
    %77 = vector.extract_strided_slice %36 {offsets = [0, 16], sizes = [16, 16], strides = [1, 1]} : vector<16x32xf32> to vector<16x16xf32>
    %78 = vector.shape_cast %77 : vector<16x16xf32> to vector<2x8x16xf32>
    %79 = arith.truncf %78 : vector<2x8x16xf32> to vector<2x8x16xbf16>
    "tpu.trace_start"() <{level = 10 : i32, message = "bqd,bkd->bqk"}> : () -> ()
    %cst_29 = arith.constant dense<0.000000e+00> : vector<2x8x8xf32>
    %80 = tpu.matmul %73, %76, %cst_29 {dimension_numbers = #tpu.dot_dimension_numbers<[2], [2], [1], [1], [0, 0, 0, 1, 1, 1], [0], [0]>} : vector<2x8x16xbf16>, vector<2x8x16xbf16>, vector<2x8x8xf32> -> vector<2x8x8xf32>
    "tpu.trace_stop"() : () -> ()
    %cst_30 = arith.constant 2.500000e-01 : f32
    %81 = vector.broadcast %cst_30 : f32 to vector<2x8x8xf32>
    %82 = arith.mulf %80, %81 : vector<2x8x8xf32>
    %83 = vector.broadcast %25 : vector<2x1x8xf32> to vector<2x8x8xf32>
    %84 = arith.addf %82, %83 : vector<2x8x8xf32>
    %cst_31 = arith.constant dense<0xFF800000> : vector<2x8xf32>
    %85 = vector.multi_reduction <maximumf>, %84, %cst_31 [2] : vector<2x8x8xf32> to vector<2x8xf32>
    %86 = vector.shape_cast %85 : vector<2x8xf32> to vector<2x8x1xf32>
    %87 = vector.broadcast %86 : vector<2x8x1xf32> to vector<2x8x8xf32>
    %88 = arith.subf %84, %87 : vector<2x8x8xf32>
    %89 = math.exp %88 : vector<2x8x8xf32>
    %cst_32 = arith.constant dense<0.000000e+00> : vector<2x8xf32>
    %90 = vector.multi_reduction <add>, %89, %cst_32 [2] : vector<2x8x8xf32> to vector<2x8xf32>
    %91 = vector.shape_cast %90 : vector<2x8xf32> to vector<2x8x1xf32>
    %92 = tpu.reciprocal %91 {approx = true} : vector<2x8x1xf32> -> vector<2x8x1xf32>
    %93 = vector.broadcast %92 : vector<2x8x1xf32> to vector<2x8x8xf32>
    %94 = arith.mulf %89, %93 : vector<2x8x8xf32>
    %95 = arith.truncf %94 : vector<2x8x8xf32> to vector<2x8x8xbf16>
    "tpu.trace_start"() <{level = 10 : i32, message = "bqk,bkd->bqd"}> : () -> ()
    %cst_33 = arith.constant dense<0.000000e+00> : vector<2x8x16xf32>
    %96 = tpu.matmul %95, %79, %cst_33 {dimension_numbers = #tpu.dot_dimension_numbers<[2], [1], [1], [2], [0, 0, 0, 1, 1, 2], [0], [0]>} : vector<2x8x8xbf16>, vector<2x8x16xbf16>, vector<2x8x16xf32> -> vector<2x8x16xf32>
    "tpu.trace_stop"() : () -> ()
    %97 = vector.shape_cast %96 : vector<2x8x16xf32> to vector<16x16xf32>
    %98 = arith.truncf %97 : vector<16x16xf32> to vector<16x16xbf16>
    %99 = vector.extract_strided_slice %38 {offsets = [16, 0], sizes = [16, 32], strides = [1, 1]} : vector<32x32xbf16> to vector<16x32xbf16>
    %cst_34 = arith.constant dense<0.000000e+00> : vector<16x32xf32>
    %100 = tpu.matmul %98, %99, %cst_34 {dimension_numbers = #tpu.dot_dimension_numbers<[1], [0], [0], [1], [0, 0, 1, 1], [], []>} : vector<16x16xbf16>, vector<16x32xbf16>, vector<16x32xf32> -> vector<16x32xf32>
    %101 = arith.addf %70, %100 : vector<16x32xf32>
    %c0_35 = arith.constant 0 : index
    %c0_36 = arith.constant 0 : index
    %c0_37 = arith.constant 0 : index
    %102 = vector.load %arg8[%c0_35, %c0_36, %c0_37] : memref<2x1x32xf32, #tpu.memory_space<vmem>>, vector<1x1x32xf32>
    %103 = vector.shape_cast %102 : vector<1x1x32xf32> to vector<1x32xf32>
    %104 = vector.broadcast %103 : vector<1x32xf32> to vector<16x32xf32>
    %105 = arith.addf %101, %104 : vector<16x32xf32>
    %106 = arith.addf %24, %105 : vector<16x32xf32>
    %c0_38 = arith.constant 0 : index
    %c0_39 = arith.constant 0 : index
    %c0_40 = arith.constant 0 : index
    %107 = vector.load %arg9[%c0_38, %c0_39, %c0_40] : memref<2x1x32xf32, #tpu.memory_space<vmem>>, vector<1x1x32xf32>
    %108 = vector.shape_cast %107 : vector<1x1x32xf32> to vector<1x32xf32>
    %c0_41 = arith.constant 0 : index
    %c0_42 = arith.constant 0 : index
    %c0_43 = arith.constant 0 : index
    %109 = vector.load %arg10[%c0_41, %c0_42, %c0_43] : memref<2x1x32xf32, #tpu.memory_space<vmem>>, vector<1x1x32xf32>
    %110 = vector.shape_cast %109 : vector<1x1x32xf32> to vector<1x32xf32>
    %cst_44 = arith.constant dense<0.000000e+00> : vector<16xf32>
    %111 = vector.multi_reduction <add>, %106, %cst_44 [1] : vector<16x32xf32> to vector<16xf32>
    %112 = vector.shape_cast %111 : vector<16xf32> to vector<16x1xf32>
    %cst_45 = arith.constant 3.200000e+01 : f32
    %113 = vector.broadcast %cst_45 : f32 to vector<16x1xf32>
    %114 = arith.divf %112, %113 : vector<16x1xf32>
    %115 = vector.broadcast %114 : vector<16x1xf32> to vector<16x32xf32>
    %116 = arith.subf %106, %115 : vector<16x32xf32>
    %117 = arith.mulf %116, %116 : vector<16x32xf32>
    %cst_46 = arith.constant dense<0.000000e+00> : vector<16xf32>
    %118 = vector.multi_reduction <add>, %117, %cst_46 [1] : vector<16x32xf32> to vector<16xf32>
    %119 = vector.shape_cast %118 : vector<16xf32> to vector<16x1xf32>
    %cst_47 = arith.constant 3.200000e+01 : f32
    %120 = vector.broadcast %cst_47 : f32 to vector<16x1xf32>
    %121 = arith.divf %119, %120 : vector<16x1xf32>
    %122 = vector.broadcast %114 : vector<16x1xf32> to vector<16x32xf32>
    %123 = arith.subf %106, %122 : vector<16x32xf32>
    %cst_48 = arith.constant 9.99999996E-13 : f32
    %124 = vector.broadcast %cst_48 : f32 to vector<16x1xf32>
    %125 = arith.addf %121, %124 : vector<16x1xf32>
    %126 = math.rsqrt %125 : vector<16x1xf32>
    %127 = vector.broadcast %126 : vector<16x1xf32> to vector<16x32xf32>
    %128 = arith.mulf %123, %127 : vector<16x32xf32>
    %129 = vector.broadcast %108 : vector<1x32xf32> to vector<16x32xf32>
    %130 = arith.mulf %128, %129 : vector<16x32xf32>
    %131 = vector.broadcast %110 : vector<1x32xf32> to vector<16x32xf32>
    %132 = arith.addf %130, %131 : vector<16x32xf32>
    %133 = arith.truncf %132 : vector<16x32xf32> to vector<16x32xbf16>
    %c0_49 = arith.constant 0 : index
    %c0_50 = arith.constant 0 : index
    %c0_51 = arith.constant 0 : index
    %134 = vector.load %arg11[%c0_49, %c0_50, %c0_51] : memref<2x32x64xbf16, #tpu.memory_space<vmem>>, vector<1x32x64xbf16>
    %135 = vector.shape_cast %134 : vector<1x32x64xbf16> to vector<32x64xbf16>
    %cst_52 = arith.constant dense<0.000000e+00> : vector<16x64xf32>
    %136 = tpu.matmul %133, %135, %cst_52 {dimension_numbers = #tpu.dot_dimension_numbers<[1], [0], [0], [1], [0, 0, 1, 1], [], []>} : vector<16x32xbf16>, vector<32x64xbf16>, vector<16x64xf32> -> vector<16x64xf32>
    %c0_53 = arith.constant 0 : index
    %c0_54 = arith.constant 0 : index
    %c0_55 = arith.constant 0 : index
    %137 = vector.load %arg12[%c0_53, %c0_54, %c0_55] : memref<2x1x64xf32, #tpu.memory_space<vmem>>, vector<1x1x64xf32>
    %138 = vector.shape_cast %137 : vector<1x1x64xf32> to vector<1x64xf32>
    %139 = vector.broadcast %138 : vector<1x64xf32> to vector<16x64xf32>
    %140 = arith.addf %136, %139 : vector<16x64xf32>
    %cst_56 = arith.constant 5.000000e-01 : f32
    %141 = vector.broadcast %cst_56 : f32 to vector<16x64xf32>
    %142 = arith.mulf %141, %140 : vector<16x64xf32>
    %cst_57 = arith.constant 0.707106769 : f32
    %143 = vector.broadcast %cst_57 : f32 to vector<16x64xf32>
    %144 = arith.mulf %140, %143 : vector<16x64xf32>
    %145 = math.absf %144 : vector<16x64xf32>
    %cst_58 = arith.constant 0.327591091 : f32
    %146 = vector.broadcast %cst_58 : f32 to vector<16x64xf32>
    %147 = arith.mulf %146, %145 : vector<16x64xf32>
    %cst_59 = arith.constant 1.000000e+00 : f32
    %148 = vector.broadcast %cst_59 : f32 to vector<16x64xf32>
    %149 = arith.addf %148, %147 : vector<16x64xf32>
    %cst_60 = arith.constant 1.000000e+00 : f32
    %150 = vector.broadcast %cst_60 : f32 to vector<16x64xf32>
    %151 = arith.divf %150, %149 : vector<16x64xf32>
    %cst_61 = arith.constant 1.06140542 : f32
    %152 = vector.broadcast %cst_61 : f32 to vector<16x64xf32>
    %153 = arith.mulf %152, %151 : vector<16x64xf32>
    %cst_62 = arith.constant -1.45315206 : f32
    %154 = vector.broadcast %cst_62 : f32 to vector<16x64xf32>
    %155 = arith.addf %153, %154 : vector<16x64xf32>
    %156 = arith.mulf %155, %151 : vector<16x64xf32>
    %cst_63 = arith.constant 1.42141378 : f32
    %157 = vector.broadcast %cst_63 : f32 to vector<16x64xf32>
    %158 = arith.addf %156, %157 : vector<16x64xf32>
    %159 = arith.mulf %158, %151 : vector<16x64xf32>
    %cst_64 = arith.constant -0.284496725 : f32
    %160 = vector.broadcast %cst_64 : f32 to vector<16x64xf32>
    %161 = arith.addf %159, %160 : vector<16x64xf32>
    %162 = arith.mulf %161, %151 : vector<16x64xf32>
    %cst_65 = arith.constant 0.254829586 : f32
    %163 = vector.broadcast %cst_65 : f32 to vector<16x64xf32>
    %164 = arith.addf %162, %163 : vector<16x64xf32>
    %165 = arith.mulf %164, %151 : vector<16x64xf32>
    %166 = arith.mulf %145, %145 : vector<16x64xf32>
    %cst_66 = arith.constant 0.000000e+00 : f32
    %167 = vector.broadcast %cst_66 : f32 to vector<16x64xf32>
    %168 = arith.subf %167, %166 : vector<16x64xf32>
    %169 = math.exp %168 : vector<16x64xf32>
    %170 = arith.mulf %165, %169 : vector<16x64xf32>
    %cst_67 = arith.constant 1.000000e+00 : f32
    %171 = vector.broadcast %cst_67 : f32 to vector<16x64xf32>
    %172 = arith.subf %171, %170 : vector<16x64xf32>
    %cst_68 = arith.constant 0.000000e+00 : f32
    %173 = vector.broadcast %cst_68 : f32 to vector<16x64xf32>
    %174 = arith.cmpf oge, %144, %173 : vector<16x64xf32>
    %cst_69 = arith.constant 0.000000e+00 : f32
    %175 = vector.broadcast %cst_69 : f32 to vector<16x64xf32>
    %176 = arith.subf %175, %172 : vector<16x64xf32>
    %177 = arith.select %174, %172, %176 : vector<16x64xi1>, vector<16x64xf32>
    %cst_70 = arith.constant 1.000000e+00 : f32
    %178 = vector.broadcast %cst_70 : f32 to vector<16x64xf32>
    %179 = arith.addf %178, %177 : vector<16x64xf32>
    %180 = arith.mulf %142, %179 : vector<16x64xf32>
    %181 = arith.truncf %180 : vector<16x64xf32> to vector<16x64xbf16>
    %c0_71 = arith.constant 0 : index
    %c0_72 = arith.constant 0 : index
    %c0_73 = arith.constant 0 : index
    %182 = vector.load %arg13[%c0_71, %c0_72, %c0_73] : memref<2x64x32xbf16, #tpu.memory_space<vmem>>, vector<1x64x32xbf16>
    %183 = vector.shape_cast %182 : vector<1x64x32xbf16> to vector<64x32xbf16>
    %cst_74 = arith.constant dense<0.000000e+00> : vector<16x32xf32>
    %184 = tpu.matmul %181, %183, %cst_74 {dimension_numbers = #tpu.dot_dimension_numbers<[1], [0], [0], [1], [0, 0, 1, 1], [], []>} : vector<16x64xbf16>, vector<64x32xbf16>, vector<16x32xf32> -> vector<16x32xf32>
    %c0_75 = arith.constant 0 : index
    %c0_76 = arith.constant 0 : index
    %c0_77 = arith.constant 0 : index
    %185 = vector.load %arg14[%c0_75, %c0_76, %c0_77] : memref<2x1x32xf32, #tpu.memory_space<vmem>>, vector<1x1x32xf32>
    %186 = vector.shape_cast %185 : vector<1x1x32xf32> to vector<1x32xf32>
    %187 = vector.broadcast %186 : vector<1x32xf32> to vector<16x32xf32>
    %188 = arith.addf %184, %187 : vector<16x32xf32>
    %189 = arith.addf %132, %188 : vector<16x32xf32>
    %c0_78 = arith.constant 0 : index
    %c0_79 = arith.constant 0 : index
    %c0_80 = arith.constant 0 : index
    %190 = vector.load %arg15[%c0_78, %c0_79, %c0_80] : memref<2x1x32xf32, #tpu.memory_space<vmem>>, vector<1x1x32xf32>
    %191 = vector.shape_cast %190 : vector<1x1x32xf32> to vector<1x32xf32>
    %c0_81 = arith.constant 0 : index
    %c0_82 = arith.constant 0 : index
    %c0_83 = arith.constant 0 : index
    %192 = vector.load %arg16[%c0_81, %c0_82, %c0_83] : memref<2x1x32xf32, #tpu.memory_space<vmem>>, vector<1x1x32xf32>
    %193 = vector.shape_cast %192 : vector<1x1x32xf32> to vector<1x32xf32>
    %cst_84 = arith.constant dense<0.000000e+00> : vector<16xf32>
    %194 = vector.multi_reduction <add>, %189, %cst_84 [1] : vector<16x32xf32> to vector<16xf32>
    %195 = vector.shape_cast %194 : vector<16xf32> to vector<16x1xf32>
    %cst_85 = arith.constant 3.200000e+01 : f32
    %196 = vector.broadcast %cst_85 : f32 to vector<16x1xf32>
    %197 = arith.divf %195, %196 : vector<16x1xf32>
    %198 = vector.broadcast %197 : vector<16x1xf32> to vector<16x32xf32>
    %199 = arith.subf %189, %198 : vector<16x32xf32>
    %200 = arith.mulf %199, %199 : vector<16x32xf32>
    %cst_86 = arith.constant dense<0.000000e+00> : vector<16xf32>
    %201 = vector.multi_reduction <add>, %200, %cst_86 [1] : vector<16x32xf32> to vector<16xf32>
    %202 = vector.shape_cast %201 : vector<16xf32> to vector<16x1xf32>
    %cst_87 = arith.constant 3.200000e+01 : f32
    %203 = vector.broadcast %cst_87 : f32 to vector<16x1xf32>
    %204 = arith.divf %202, %203 : vector<16x1xf32>
    %205 = vector.broadcast %197 : vector<16x1xf32> to vector<16x32xf32>
    %206 = arith.subf %189, %205 : vector<16x32xf32>
    %cst_88 = arith.constant 9.99999996E-13 : f32
    %207 = vector.broadcast %cst_88 : f32 to vector<16x1xf32>
    %208 = arith.addf %204, %207 : vector<16x1xf32>
    %209 = math.rsqrt %208 : vector<16x1xf32>
    %210 = vector.broadcast %209 : vector<16x1xf32> to vector<16x32xf32>
    %211 = arith.mulf %206, %210 : vector<16x32xf32>
    %212 = vector.broadcast %191 : vector<1x32xf32> to vector<16x32xf32>
    %213 = arith.mulf %211, %212 : vector<16x32xf32>
    %214 = vector.broadcast %193 : vector<1x32xf32> to vector<16x32xf32>
    %215 = arith.addf %213, %214 : vector<16x32xf32>
    %216 = arith.truncf %215 : vector<16x32xf32> to vector<16x32xbf16>
    %c1 = arith.constant 1 : index
    %c0_89 = arith.constant 0 : index
    %c0_90 = arith.constant 0 : index
    %217 = vector.load %arg5[%c1, %c0_89, %c0_90] : memref<2x32x96xbf16, #tpu.memory_space<vmem>>, vector<1x32x96xbf16>
    %218 = vector.shape_cast %217 : vector<1x32x96xbf16> to vector<32x96xbf16>
    %cst_91 = arith.constant dense<0.000000e+00> : vector<16x96xf32>
    %219 = tpu.matmul %216, %218, %cst_91 {dimension_numbers = #tpu.dot_dimension_numbers<[1], [0], [0], [1], [0, 0, 1, 1], [], []>} : vector<16x32xbf16>, vector<32x96xbf16>, vector<16x96xf32> -> vector<16x96xf32>
    %c1_92 = arith.constant 1 : index
    %c0_93 = arith.constant 0 : index
    %c0_94 = arith.constant 0 : index
    %220 = vector.load %arg6[%c1_92, %c0_93, %c0_94] : memref<2x1x96xf32, #tpu.memory_space<vmem>>, vector<1x1x96xf32>
    %221 = vector.shape_cast %220 : vector<1x1x96xf32> to vector<1x96xf32>
    %222 = vector.broadcast %221 : vector<1x96xf32> to vector<16x96xf32>
    %223 = arith.addf %219, %222 : vector<16x96xf32>
    %224 = vector.extract_strided_slice %223 {offsets = [0, 0], sizes = [16, 32], strides = [1, 1]} : vector<16x96xf32> to vector<16x32xf32>
    %225 = vector.extract_strided_slice %223 {offsets = [0, 32], sizes = [16, 32], strides = [1, 1]} : vector<16x96xf32> to vector<16x32xf32>
    %226 = vector.extract_strided_slice %223 {offsets = [0, 64], sizes = [16, 32], strides = [1, 1]} : vector<16x96xf32> to vector<16x32xf32>
    %c1_95 = arith.constant 1 : index
    %c0_96 = arith.constant 0 : index
    %c0_97 = arith.constant 0 : index
    %227 = vector.load %arg7[%c1_95, %c0_96, %c0_97] : memref<2x32x32xbf16, #tpu.memory_space<vmem>>, vector<1x32x32xbf16>
    %228 = vector.shape_cast %227 : vector<1x32x32xbf16> to vector<32x32xbf16>
    %cst_98 = arith.constant 0.000000e+00 : f32
    %229 = vector.broadcast %cst_98 : f32 to vector<16x32xf32>
    %230 = vector.extract_strided_slice %224 {offsets = [0, 0], sizes = [16, 16], strides = [1, 1]} : vector<16x32xf32> to vector<16x16xf32>
    %231 = vector.shape_cast %230 : vector<16x16xf32> to vector<2x8x16xf32>
    %232 = arith.truncf %231 : vector<2x8x16xf32> to vector<2x8x16xbf16>
    %233 = vector.extract_strided_slice %225 {offsets = [0, 0], sizes = [16, 16], strides = [1, 1]} : vector<16x32xf32> to vector<16x16xf32>
    %234 = vector.shape_cast %233 : vector<16x16xf32> to vector<2x8x16xf32>
    %235 = arith.truncf %234 : vector<2x8x16xf32> to vector<2x8x16xbf16>
    %236 = vector.extract_strided_slice %226 {offsets = [0, 0], sizes = [16, 16], strides = [1, 1]} : vector<16x32xf32> to vector<16x16xf32>
    %237 = vector.shape_cast %236 : vector<16x16xf32> to vector<2x8x16xf32>
    %238 = arith.truncf %237 : vector<2x8x16xf32> to vector<2x8x16xbf16>
    "tpu.trace_start"() <{level = 10 : i32, message = "bqd,bkd->bqk"}> : () -> ()
    %cst_99 = arith.constant dense<0.000000e+00> : vector<2x8x8xf32>
    %239 = tpu.matmul %232, %235, %cst_99 {dimension_numbers = #tpu.dot_dimension_numbers<[2], [2], [1], [1], [0, 0, 0, 1, 1, 1], [0], [0]>} : vector<2x8x16xbf16>, vector<2x8x16xbf16>, vector<2x8x8xf32> -> vector<2x8x8xf32>
    "tpu.trace_stop"() : () -> ()
    %cst_100 = arith.constant 2.500000e-01 : f32
    %240 = vector.broadcast %cst_100 : f32 to vector<2x8x8xf32>
    %241 = arith.mulf %239, %240 : vector<2x8x8xf32>
    %242 = vector.broadcast %25 : vector<2x1x8xf32> to vector<2x8x8xf32>
    %243 = arith.addf %241, %242 : vector<2x8x8xf32>
    %cst_101 = arith.constant dense<0xFF800000> : vector<2x8xf32>
    %244 = vector.multi_reduction <maximumf>, %243, %cst_101 [2] : vector<2x8x8xf32> to vector<2x8xf32>
    %245 = vector.shape_cast %244 : vector<2x8xf32> to vector<2x8x1xf32>
    %246 = vector.broadcast %245 : vector<2x8x1xf32> to vector<2x8x8xf32>
    %247 = arith.subf %243, %246 : vector<2x8x8xf32>
    %248 = math.exp %247 : vector<2x8x8xf32>
    %cst_102 = arith.constant dense<0.000000e+00> : vector<2x8xf32>
    %249 = vector.multi_reduction <add>, %248, %cst_102 [2] : vector<2x8x8xf32> to vector<2x8xf32>
    %250 = vector.shape_cast %249 : vector<2x8xf32> to vector<2x8x1xf32>
    %251 = tpu.reciprocal %250 {approx = true} : vector<2x8x1xf32> -> vector<2x8x1xf32>
    %252 = vector.broadcast %251 : vector<2x8x1xf32> to vector<2x8x8xf32>
    %253 = arith.mulf %248, %252 : vector<2x8x8xf32>
    %254 = arith.truncf %253 : vector<2x8x8xf32> to vector<2x8x8xbf16>
    "tpu.trace_start"() <{level = 10 : i32, message = "bqk,bkd->bqd"}> : () -> ()
    %cst_103 = arith.constant dense<0.000000e+00> : vector<2x8x16xf32>
    %255 = tpu.matmul %254, %238, %cst_103 {dimension_numbers = #tpu.dot_dimension_numbers<[2], [1], [1], [2], [0, 0, 0, 1, 1, 2], [0], [0]>} : vector<2x8x8xbf16>, vector<2x8x16xbf16>, vector<2x8x16xf32> -> vector<2x8x16xf32>
    "tpu.trace_stop"() : () -> ()
    %256 = vector.shape_cast %255 : vector<2x8x16xf32> to vector<16x16xf32>
    %257 = arith.truncf %256 : vector<16x16xf32> to vector<16x16xbf16>
    %258 = vector.extract_strided_slice %228 {offsets = [0, 0], sizes = [16, 32], strides = [1, 1]} : vector<32x32xbf16> to vector<16x32xbf16>
    %cst_104 = arith.constant dense<0.000000e+00> : vector<16x32xf32>
    %259 = tpu.matmul %257, %258, %cst_104 {dimension_numbers = #tpu.dot_dimension_numbers<[1], [0], [0], [1], [0, 0, 1, 1], [], []>} : vector<16x16xbf16>, vector<16x32xbf16>, vector<16x32xf32> -> vector<16x32xf32>
    %260 = arith.addf %229, %259 : vector<16x32xf32>
    %261 = vector.extract_strided_slice %224 {offsets = [0, 16], sizes = [16, 16], strides = [1, 1]} : vector<16x32xf32> to vector<16x16xf32>
    %262 = vector.shape_cast %261 : vector<16x16xf32> to vector<2x8x16xf32>
    %263 = arith.truncf %262 : vector<2x8x16xf32> to vector<2x8x16xbf16>
    %264 = vector.extract_strided_slice %225 {offsets = [0, 16], sizes = [16, 16], strides = [1, 1]} : vector<16x32xf32> to vector<16x16xf32>
    %265 = vector.shape_cast %264 : vector<16x16xf32> to vector<2x8x16xf32>
    %266 = arith.truncf %265 : vector<2x8x16xf32> to vector<2x8x16xbf16>
    %267 = vector.extract_strided_slice %226 {offsets = [0, 16], sizes = [16, 16], strides = [1, 1]} : vector<16x32xf32> to vector<16x16xf32>
    %268 = vector.shape_cast %267 : vector<16x16xf32> to vector<2x8x16xf32>
    %269 = arith.truncf %268 : vector<2x8x16xf32> to vector<2x8x16xbf16>
    "tpu.trace_start"() <{level = 10 : i32, message = "bqd,bkd->bqk"}> : () -> ()
    %cst_105 = arith.constant dense<0.000000e+00> : vector<2x8x8xf32>
    %270 = tpu.matmul %263, %266, %cst_105 {dimension_numbers = #tpu.dot_dimension_numbers<[2], [2], [1], [1], [0, 0, 0, 1, 1, 1], [0], [0]>} : vector<2x8x16xbf16>, vector<2x8x16xbf16>, vector<2x8x8xf32> -> vector<2x8x8xf32>
    "tpu.trace_stop"() : () -> ()
    %cst_106 = arith.constant 2.500000e-01 : f32
    %271 = vector.broadcast %cst_106 : f32 to vector<2x8x8xf32>
    %272 = arith.mulf %270, %271 : vector<2x8x8xf32>
    %273 = vector.broadcast %25 : vector<2x1x8xf32> to vector<2x8x8xf32>
    %274 = arith.addf %272, %273 : vector<2x8x8xf32>
    %cst_107 = arith.constant dense<0xFF800000> : vector<2x8xf32>
    %275 = vector.multi_reduction <maximumf>, %274, %cst_107 [2] : vector<2x8x8xf32> to vector<2x8xf32>
    %276 = vector.shape_cast %275 : vector<2x8xf32> to vector<2x8x1xf32>
    %277 = vector.broadcast %276 : vector<2x8x1xf32> to vector<2x8x8xf32>
    %278 = arith.subf %274, %277 : vector<2x8x8xf32>
    %279 = math.exp %278 : vector<2x8x8xf32>
    %cst_108 = arith.constant dense<0.000000e+00> : vector<2x8xf32>
    %280 = vector.multi_reduction <add>, %279, %cst_108 [2] : vector<2x8x8xf32> to vector<2x8xf32>
    %281 = vector.shape_cast %280 : vector<2x8xf32> to vector<2x8x1xf32>
    %282 = tpu.reciprocal %281 {approx = true} : vector<2x8x1xf32> -> vector<2x8x1xf32>
    %283 = vector.broadcast %282 : vector<2x8x1xf32> to vector<2x8x8xf32>
    %284 = arith.mulf %279, %283 : vector<2x8x8xf32>
    %285 = arith.truncf %284 : vector<2x8x8xf32> to vector<2x8x8xbf16>
    "tpu.trace_start"() <{level = 10 : i32, message = "bqk,bkd->bqd"}> : () -> ()
    %cst_109 = arith.constant dense<0.000000e+00> : vector<2x8x16xf32>
    %286 = tpu.matmul %285, %269, %cst_109 {dimension_numbers = #tpu.dot_dimension_numbers<[2], [1], [1], [2], [0, 0, 0, 1, 1, 2], [0], [0]>} : vector<2x8x8xbf16>, vector<2x8x16xbf16>, vector<2x8x16xf32> -> vector<2x8x16xf32>
    "tpu.trace_stop"() : () -> ()
    %287 = vector.shape_cast %286 : vector<2x8x16xf32> to vector<16x16xf32>
    %288 = arith.truncf %287 : vector<16x16xf32> to vector<16x16xbf16>
    %289 = vector.extract_strided_slice %228 {offsets = [16, 0], sizes = [16, 32], strides = [1, 1]} : vector<32x32xbf16> to vector<16x32xbf16>
    %cst_110 = arith.constant dense<0.000000e+00> : vector<16x32xf32>
    %290 = tpu.matmul %288, %289, %cst_110 {dimension_numbers = #tpu.dot_dimension_numbers<[1], [0], [0], [1], [0, 0, 1, 1], [], []>} : vector<16x16xbf16>, vector<16x32xbf16>, vector<16x32xf32> -> vector<16x32xf32>
    %291 = arith.addf %260, %290 : vector<16x32xf32>
    %c1_111 = arith.constant 1 : index
    %c0_112 = arith.constant 0 : index
    %c0_113 = arith.constant 0 : index
    %292 = vector.load %arg8[%c1_111, %c0_112, %c0_113] : memref<2x1x32xf32, #tpu.memory_space<vmem>>, vector<1x1x32xf32>
    %293 = vector.shape_cast %292 : vector<1x1x32xf32> to vector<1x32xf32>
    %294 = vector.broadcast %293 : vector<1x32xf32> to vector<16x32xf32>
    %295 = arith.addf %291, %294 : vector<16x32xf32>
    %296 = arith.addf %215, %295 : vector<16x32xf32>
    %c1_114 = arith.constant 1 : index
    %c0_115 = arith.constant 0 : index
    %c0_116 = arith.constant 0 : index
    %297 = vector.load %arg9[%c1_114, %c0_115, %c0_116] : memref<2x1x32xf32, #tpu.memory_space<vmem>>, vector<1x1x32xf32>
    %298 = vector.shape_cast %297 : vector<1x1x32xf32> to vector<1x32xf32>
    %c1_117 = arith.constant 1 : index
    %c0_118 = arith.constant 0 : index
    %c0_119 = arith.constant 0 : index
    %299 = vector.load %arg10[%c1_117, %c0_118, %c0_119] : memref<2x1x32xf32, #tpu.memory_space<vmem>>, vector<1x1x32xf32>
    %300 = vector.shape_cast %299 : vector<1x1x32xf32> to vector<1x32xf32>
    %cst_120 = arith.constant dense<0.000000e+00> : vector<16xf32>
    %301 = vector.multi_reduction <add>, %296, %cst_120 [1] : vector<16x32xf32> to vector<16xf32>
    %302 = vector.shape_cast %301 : vector<16xf32> to vector<16x1xf32>
    %cst_121 = arith.constant 3.200000e+01 : f32
    %303 = vector.broadcast %cst_121 : f32 to vector<16x1xf32>
    %304 = arith.divf %302, %303 : vector<16x1xf32>
    %305 = vector.broadcast %304 : vector<16x1xf32> to vector<16x32xf32>
    %306 = arith.subf %296, %305 : vector<16x32xf32>
    %307 = arith.mulf %306, %306 : vector<16x32xf32>
    %cst_122 = arith.constant dense<0.000000e+00> : vector<16xf32>
    %308 = vector.multi_reduction <add>, %307, %cst_122 [1] : vector<16x32xf32> to vector<16xf32>
    %309 = vector.shape_cast %308 : vector<16xf32> to vector<16x1xf32>
    %cst_123 = arith.constant 3.200000e+01 : f32
    %310 = vector.broadcast %cst_123 : f32 to vector<16x1xf32>
    %311 = arith.divf %309, %310 : vector<16x1xf32>
    %312 = vector.broadcast %304 : vector<16x1xf32> to vector<16x32xf32>
    %313 = arith.subf %296, %312 : vector<16x32xf32>
    %cst_124 = arith.constant 9.99999996E-13 : f32
    %314 = vector.broadcast %cst_124 : f32 to vector<16x1xf32>
    %315 = arith.addf %311, %314 : vector<16x1xf32>
    %316 = math.rsqrt %315 : vector<16x1xf32>
    %317 = vector.broadcast %316 : vector<16x1xf32> to vector<16x32xf32>
    %318 = arith.mulf %313, %317 : vector<16x32xf32>
    %319 = vector.broadcast %298 : vector<1x32xf32> to vector<16x32xf32>
    %320 = arith.mulf %318, %319 : vector<16x32xf32>
    %321 = vector.broadcast %300 : vector<1x32xf32> to vector<16x32xf32>
    %322 = arith.addf %320, %321 : vector<16x32xf32>
    %323 = arith.truncf %322 : vector<16x32xf32> to vector<16x32xbf16>
    %c1_125 = arith.constant 1 : index
    %c0_126 = arith.constant 0 : index
    %c0_127 = arith.constant 0 : index
    %324 = vector.load %arg11[%c1_125, %c0_126, %c0_127] : memref<2x32x64xbf16, #tpu.memory_space<vmem>>, vector<1x32x64xbf16>
    %325 = vector.shape_cast %324 : vector<1x32x64xbf16> to vector<32x64xbf16>
    %cst_128 = arith.constant dense<0.000000e+00> : vector<16x64xf32>
    %326 = tpu.matmul %323, %325, %cst_128 {dimension_numbers = #tpu.dot_dimension_numbers<[1], [0], [0], [1], [0, 0, 1, 1], [], []>} : vector<16x32xbf16>, vector<32x64xbf16>, vector<16x64xf32> -> vector<16x64xf32>
    %c1_129 = arith.constant 1 : index
    %c0_130 = arith.constant 0 : index
    %c0_131 = arith.constant 0 : index
    %327 = vector.load %arg12[%c1_129, %c0_130, %c0_131] : memref<2x1x64xf32, #tpu.memory_space<vmem>>, vector<1x1x64xf32>
    %328 = vector.shape_cast %327 : vector<1x1x64xf32> to vector<1x64xf32>
    %329 = vector.broadcast %328 : vector<1x64xf32> to vector<16x64xf32>
    %330 = arith.addf %326, %329 : vector<16x64xf32>
    %cst_132 = arith.constant 5.000000e-01 : f32
    %331 = vector.broadcast %cst_132 : f32 to vector<16x64xf32>
    %332 = arith.mulf %331, %330 : vector<16x64xf32>
    %cst_133 = arith.constant 0.707106769 : f32
    %333 = vector.broadcast %cst_133 : f32 to vector<16x64xf32>
    %334 = arith.mulf %330, %333 : vector<16x64xf32>
    %335 = math.absf %334 : vector<16x64xf32>
    %cst_134 = arith.constant 0.327591091 : f32
    %336 = vector.broadcast %cst_134 : f32 to vector<16x64xf32>
    %337 = arith.mulf %336, %335 : vector<16x64xf32>
    %cst_135 = arith.constant 1.000000e+00 : f32
    %338 = vector.broadcast %cst_135 : f32 to vector<16x64xf32>
    %339 = arith.addf %338, %337 : vector<16x64xf32>
    %cst_136 = arith.constant 1.000000e+00 : f32
    %340 = vector.broadcast %cst_136 : f32 to vector<16x64xf32>
    %341 = arith.divf %340, %339 : vector<16x64xf32>
    %cst_137 = arith.constant 1.06140542 : f32
    %342 = vector.broadcast %cst_137 : f32 to vector<16x64xf32>
    %343 = arith.mulf %342, %341 : vector<16x64xf32>
    %cst_138 = arith.constant -1.45315206 : f32
    %344 = vector.broadcast %cst_138 : f32 to vector<16x64xf32>
    %345 = arith.addf %343, %344 : vector<16x64xf32>
    %346 = arith.mulf %345, %341 : vector<16x64xf32>
    %cst_139 = arith.constant 1.42141378 : f32
    %347 = vector.broadcast %cst_139 : f32 to vector<16x64xf32>
    %348 = arith.addf %346, %347 : vector<16x64xf32>
    %349 = arith.mulf %348, %341 : vector<16x64xf32>
    %cst_140 = arith.constant -0.284496725 : f32
    %350 = vector.broadcast %cst_140 : f32 to vector<16x64xf32>
    %351 = arith.addf %349, %350 : vector<16x64xf32>
    %352 = arith.mulf %351, %341 : vector<16x64xf32>
    %cst_141 = arith.constant 0.254829586 : f32
    %353 = vector.broadcast %cst_141 : f32 to vector<16x64xf32>
    %354 = arith.addf %352, %353 : vector<16x64xf32>
    %355 = arith.mulf %354, %341 : vector<16x64xf32>
    %356 = arith.mulf %335, %335 : vector<16x64xf32>
    %cst_142 = arith.constant 0.000000e+00 : f32
    %357 = vector.broadcast %cst_142 : f32 to vector<16x64xf32>
    %358 = arith.subf %357, %356 : vector<16x64xf32>
    %359 = math.exp %358 : vector<16x64xf32>
    %360 = arith.mulf %355, %359 : vector<16x64xf32>
    %cst_143 = arith.constant 1.000000e+00 : f32
    %361 = vector.broadcast %cst_143 : f32 to vector<16x64xf32>
    %362 = arith.subf %361, %360 : vector<16x64xf32>
    %cst_144 = arith.constant 0.000000e+00 : f32
    %363 = vector.broadcast %cst_144 : f32 to vector<16x64xf32>
    %364 = arith.cmpf oge, %334, %363 : vector<16x64xf32>
    %cst_145 = arith.constant 0.000000e+00 : f32
    %365 = vector.broadcast %cst_145 : f32 to vector<16x64xf32>
    %366 = arith.subf %365, %362 : vector<16x64xf32>
    %367 = arith.select %364, %362, %366 : vector<16x64xi1>, vector<16x64xf32>
    %cst_146 = arith.constant 1.000000e+00 : f32
    %368 = vector.broadcast %cst_146 : f32 to vector<16x64xf32>
    %369 = arith.addf %368, %367 : vector<16x64xf32>
    %370 = arith.mulf %332, %369 : vector<16x64xf32>
    %371 = arith.truncf %370 : vector<16x64xf32> to vector<16x64xbf16>
    %c1_147 = arith.constant 1 : index
    %c0_148 = arith.constant 0 : index
    %c0_149 = arith.constant 0 : index
    %372 = vector.load %arg13[%c1_147, %c0_148, %c0_149] : memref<2x64x32xbf16, #tpu.memory_space<vmem>>, vector<1x64x32xbf16>
    %373 = vector.shape_cast %372 : vector<1x64x32xbf16> to vector<64x32xbf16>
    %cst_150 = arith.constant dense<0.000000e+00> : vector<16x32xf32>
    %374 = tpu.matmul %371, %373, %cst_150 {dimension_numbers = #tpu.dot_dimension_numbers<[1], [0], [0], [1], [0, 0, 1, 1], [], []>} : vector<16x64xbf16>, vector<64x32xbf16>, vector<16x32xf32> -> vector<16x32xf32>
    %c1_151 = arith.constant 1 : index
    %c0_152 = arith.constant 0 : index
    %c0_153 = arith.constant 0 : index
    %375 = vector.load %arg14[%c1_151, %c0_152, %c0_153] : memref<2x1x32xf32, #tpu.memory_space<vmem>>, vector<1x1x32xf32>
    %376 = vector.shape_cast %375 : vector<1x1x32xf32> to vector<1x32xf32>
    %377 = vector.broadcast %376 : vector<1x32xf32> to vector<16x32xf32>
    %378 = arith.addf %374, %377 : vector<16x32xf32>
    %379 = arith.addf %322, %378 : vector<16x32xf32>
    %c1_154 = arith.constant 1 : index
    %c0_155 = arith.constant 0 : index
    %c0_156 = arith.constant 0 : index
    %380 = vector.load %arg15[%c1_154, %c0_155, %c0_156] : memref<2x1x32xf32, #tpu.memory_space<vmem>>, vector<1x1x32xf32>
    %381 = vector.shape_cast %380 : vector<1x1x32xf32> to vector<1x32xf32>
    %c1_157 = arith.constant 1 : index
    %c0_158 = arith.constant 0 : index
    %c0_159 = arith.constant 0 : index
    %382 = vector.load %arg16[%c1_157, %c0_158, %c0_159] : memref<2x1x32xf32, #tpu.memory_space<vmem>>, vector<1x1x32xf32>
    %383 = vector.shape_cast %382 : vector<1x1x32xf32> to vector<1x32xf32>
    %cst_160 = arith.constant dense<0.000000e+00> : vector<16xf32>
    %384 = vector.multi_reduction <add>, %379, %cst_160 [1] : vector<16x32xf32> to vector<16xf32>
    %385 = vector.shape_cast %384 : vector<16xf32> to vector<16x1xf32>
    %cst_161 = arith.constant 3.200000e+01 : f32
    %386 = vector.broadcast %cst_161 : f32 to vector<16x1xf32>
    %387 = arith.divf %385, %386 : vector<16x1xf32>
    %388 = vector.broadcast %387 : vector<16x1xf32> to vector<16x32xf32>
    %389 = arith.subf %379, %388 : vector<16x32xf32>
    %390 = arith.mulf %389, %389 : vector<16x32xf32>
    %cst_162 = arith.constant dense<0.000000e+00> : vector<16xf32>
    %391 = vector.multi_reduction <add>, %390, %cst_162 [1] : vector<16x32xf32> to vector<16xf32>
    %392 = vector.shape_cast %391 : vector<16xf32> to vector<16x1xf32>
    %cst_163 = arith.constant 3.200000e+01 : f32
    %393 = vector.broadcast %cst_163 : f32 to vector<16x1xf32>
    %394 = arith.divf %392, %393 : vector<16x1xf32>
    %395 = vector.broadcast %387 : vector<16x1xf32> to vector<16x32xf32>
    %396 = arith.subf %379, %395 : vector<16x32xf32>
    %cst_164 = arith.constant 9.99999996E-13 : f32
    %397 = vector.broadcast %cst_164 : f32 to vector<16x1xf32>
    %398 = arith.addf %394, %397 : vector<16x1xf32>
    %399 = math.rsqrt %398 : vector<16x1xf32>
    %400 = vector.broadcast %399 : vector<16x1xf32> to vector<16x32xf32>
    %401 = arith.mulf %396, %400 : vector<16x32xf32>
    %402 = vector.broadcast %381 : vector<1x32xf32> to vector<16x32xf32>
    %403 = arith.mulf %401, %402 : vector<16x32xf32>
    %404 = vector.broadcast %383 : vector<1x32xf32> to vector<16x32xf32>
    %405 = arith.addf %403, %404 : vector<16x32xf32>
    %406 = vector.extract_strided_slice %405 {offsets = [0, 0], sizes = [1, 32], strides = [1, 1]} : vector<16x32xf32> to vector<1x32xf32>
    %c0_165 = arith.constant 0 : index
    %c0_166 = arith.constant 0 : index
    %407 = vector.load %arg17[%c0_165, %c0_166] : memref<2x32xf32, #tpu.memory_space<vmem>>, vector<1x32xf32>
    tpu.vector_store %arg17[%c0_165, %c0_166], %406 {strides = array<i32>} : memref<2x32xf32, #tpu.memory_space<vmem>>, vector<1x32xf32>,
    %408 = vector.extract_strided_slice %405 {offsets = [8, 0], sizes = [1, 32], strides = [1, 1]} : vector<16x32xf32> to vector<1x32xf32>
    %c1_167 = arith.constant 1 : index
    %c0_168 = arith.constant 0 : index
    %409 = vector.load %arg17[%c1_167, %c0_168] : memref<2x32xf32, #tpu.memory_space<vmem>>, vector<1x32xf32>
    tpu.vector_store %arg17[%c1_167, %c0_168], %408 {strides = array<i32>} : memref<2x32xf32, #tpu.memory_space<vmem>>, vector<1x32xf32>,
    return
  }
  func.func @transform_0(%arg0: i32) -> (i32, i32) {
    %c0_i32 = arith.constant 0 : i32
    %c0_i32_0 = arith.constant 0 : i32
    %c0_i32_1 = arith.constant 0 : i32
    return %c0_i32, %c0_i32_0 : i32, i32
  }
  func.func @transform_1(%arg0: i32) -> (i32, i32, i32) {
    %c0_i32 = arith.constant 0 : i32
    %c0_i32_0 = arith.constant 0 : i32
    %c0_i32_1 = arith.constant 0 : i32
    %c0_i32_2 = arith.constant 0 : i32
    return %c0_i32, %c0_i32_0, %c0_i32_1 : i32, i32, i32
  }
  func.func @transform_2(%arg0: i32) -> (i32, i32) {
    %c0_i32 = arith.constant 0 : i32
    %c0_i32_0 = arith.constant 0 : i32
    %c0_i32_1 = arith.constant 0 : i32
    return %c0_i32, %c0_i32_0 : i32, i32
  }
  func.func @transform_3(%arg0: i32) -> (i32, i32) {
    %c0_i32 = arith.constant 0 : i32
    %c0_i32_0 = arith.constant 0 : i32
    %c0_i32_1 = arith.constant 0 : i32
    return %c0_i32, %c0_i32_0 : i32, i32
  }
  func.func @transform_4(%arg0: i32) -> (i32, i32, i32) {
    %c0_i32 = arith.constant 0 : i32
    %c0_i32_0 = arith.constant 0 : i32
    %c0_i32_1 = arith.constant 0 : i32
    %c0_i32_2 = arith.constant 0 : i32
    return %c0_i32, %c0_i32_0, %c0_i32_1 : i32, i32, i32
  }
  func.func @transform_5(%arg0: i32) -> (i32, i32, i32) {
    %c0_i32 = arith.constant 0 : i32
    %c0_i32_0 = arith.constant 0 : i32
    %c0_i32_1 = arith.constant 0 : i32
    %c0_i32_2 = arith.constant 0 : i32
    return %c0_i32, %c0_i32_0, %c0_i32_1 : i32, i32, i32
  }
  func.func @transform_6(%arg0: i32) -> (i32, i32, i32) {
    %c0_i32 = arith.constant 0 : i32
    %c0_i32_0 = arith.constant 0 : i32
    %c0_i32_1 = arith.constant 0 : i32
    %c0_i32_2 = arith.constant 0 : i32
    return %c0_i32, %c0_i32_0, %c0_i32_1 : i32, i32, i32
  }
  func.func @transform_7(%arg0: i32) -> (i32, i32, i32) {
    %c0_i32 = arith.constant 0 : i32
    %c0_i32_0 = arith.constant 0 : i32
    %c0_i32_1 = arith.constant 0 : i32
    %c0_i32_2 = arith.constant 0 : i32
    return %c0_i32, %c0_i32_0, %c0_i32_1 : i32, i32, i32
  }
  func.func @transform_8(%arg0: i32) -> (i32, i32, i32) {
    %c0_i32 = arith.constant 0 : i32
    %c0_i32_0 = arith.constant 0 : i32
    %c0_i32_1 = arith.constant 0 : i32
    %c0_i32_2 = arith.constant 0 : i32
    return %c0_i32, %c0_i32_0, %c0_i32_1 : i32, i32, i32
  }
  func.func @transform_9(%arg0: i32) -> (i32, i32, i32) {
    %c0_i32 = arith.constant 0 : i32
    %c0_i32_0 = arith.constant 0 : i32
    %c0_i32_1 = arith.constant 0 : i32
    %c0_i32_2 = arith.constant 0 : i32
    return %c0_i32, %c0_i32_0, %c0_i32_1 : i32, i32, i32
  }
  func.func @transform_10(%arg0: i32) -> (i32, i32, i32) {
    %c0_i32 = arith.constant 0 : i32
    %c0_i32_0 = arith.constant 0 : i32
    %c0_i32_1 = arith.constant 0 : i32
    %c0_i32_2 = arith.constant 0 : i32
    return %c0_i32, %c0_i32_0, %c0_i32_1 : i32, i32, i32
  }
  func.func @transform_11(%arg0: i32) -> (i32, i32, i32) {
    %c0_i32 = arith.constant 0 : i32
    %c0_i32_0 = arith.constant 0 : i32
    %c0_i32_1 = arith.constant 0 : i32
    %c0_i32_2 = arith.constant 0 : i32
    return %c0_i32, %c0_i32_0, %c0_i32_1 : i32, i32, i32
  }
  func.func @transform_12(%arg0: i32) -> (i32, i32, i32) {
    %c0_i32 = arith.constant 0 : i32
    %c0_i32_0 = arith.constant 0 : i32
    %c0_i32_1 = arith.constant 0 : i32
    %c0_i32_2 = arith.constant 0 : i32
    return %c0_i32, %c0_i32_0, %c0_i32_1 : i32, i32, i32
  }
  func.func @transform_13(%arg0: i32) -> (i32, i32, i32) {
    %c0_i32 = arith.constant 0 : i32
    %c0_i32_0 = arith.constant 0 : i32
    %c0_i32_1 = arith.constant 0 : i32
    %c0_i32_2 = arith.constant 0 : i32
    return %c0_i32, %c0_i32_0, %c0_i32_1 : i32, i32, i32
  }
  func.func @transform_14(%arg0: i32) -> (i32, i32, i32) {
    %c0_i32 = arith.constant 0 : i32
    %c0_i32_0 = arith.constant 0 : i32
    %c0_i32_1 = arith.constant 0 : i32
    %c0_i32_2 = arith.constant 0 : i32
    return %c0_i32, %c0_i32_0, %c0_i32_1 : i32, i32, i32
  }
  func.func @transform_15(%arg0: i32) -> (i32, i32, i32) {
    %c0_i32 = arith.constant 0 : i32
    %c0_i32_0 = arith.constant 0 : i32
    %c0_i32_1 = arith.constant 0 : i32
    %c0_i32_2 = arith.constant 0 : i32
    return %c0_i32, %c0_i32_0, %c0_i32_1 : i32, i32, i32
  }
  func.func @transform_16(%arg0: i32) -> (i32, i32) {
    %c0_i32 = arith.constant 0 : i32
    %c0_i32_0 = arith.constant 0 : i32
    %c0_i32_1 = arith.constant 0 : i32
    return %c0_i32, %c0_i32_0 : i32, i32
  }
}

</mosaic_0001>

<llo_original>
// kernel: bert_encode.1
$region0: #{bert_encode.1}
  #allocation0 [shape = 'u32[]', space=smem, size = 0x4, offset = 0x4, fixed_abs, tag = 'smem constant byte address 0x4 - core index']
  #allocation1 [shape = 'u32[144,128]{1,0:T(1,128)}', space=vmem, size = 0x12000, scoped, tag = 'internal scratch']
  %s0 = inlined_call_operand.vmem [shape: f32[16,32], index: 0, kind: input, shape index: {}]
  %s1 = inlined_call_operand.vmem [shape: f32[2,1,8], index: 1, kind: input, shape index: {}]
  %s2 = inlined_call_operand.vmem [shape: f32[1,32], index: 2, kind: input, shape index: {}]
  %s3 = inlined_call_operand.vmem [shape: f32[1,32], index: 3, kind: input, shape index: {}]
  %s4 = inlined_call_operand.vmem [shape: bf16[2,32,96], index: 4, kind: input, shape index: {}]
  %s5 = inlined_call_operand.vmem [shape: f32[2,1,96], index: 5, kind: input, shape index: {}]
  %s6 = inlined_call_operand.vmem [shape: bf16[2,32,32], index: 6, kind: input, shape index: {}]
  %s7 = inlined_call_operand.vmem [shape: f32[2,1,32], index: 7, kind: input, shape index: {}]
  %s8 = inlined_call_operand.vmem [shape: f32[2,1,32], index: 8, kind: input, shape index: {}]
  %s9 = inlined_call_operand.vmem [shape: f32[2,1,32], index: 9, kind: input, shape index: {}]
  %s10 = inlined_call_operand.vmem [shape: bf16[2,32,64], index: 10, kind: input, shape index: {}]
  %s11 = inlined_call_operand.vmem [shape: f32[2,1,64], index: 11, kind: input, shape index: {}]
  %s12 = inlined_call_operand.vmem [shape: bf16[2,64,32], index: 12, kind: input, shape index: {}]
  %s13 = inlined_call_operand.vmem [shape: f32[2,1,32], index: 13, kind: input, shape index: {}]
  %s14 = inlined_call_operand.vmem [shape: f32[2,1,32], index: 14, kind: input, shape index: {}]
  %s15 = inlined_call_operand.vmem [shape: f32[2,1,32], index: 15, kind: input, shape index: {}]
  %s16 = inlined_call_operand.hbm [shape: f32[2,32], index: 16, kind: output, shape index: {}]
  %s17 = sld [smem:[#allocation0]]
  $region74: #{bert_encode.1} parent=0
    _
  %s19 = ssub.s32 1, %s17
  %s20 = scalar_select 0, %s19, %s17
  $region1: #{bert_encode.1} parent=0
    #allocation2 [shape = 'u8[1024]{0}', space=vmem, size = 0x400, scoped, tag = 'output window, operand 0, single buffered']
    #allocation3 [shape = 's32[1]{0}', space=sflag, size = 0x4, scoped, tag = 'scoped memory for bert_encode.1']
    %21 = vsyncpa [#allocation3], 0
    // Predicated region
    $region2: #{bert_encode.1} parent=1 // pred_check
      _
    $region3: #{bert_encode.1} parent=1 // pred_check_branch
      %23 = sbr.rel (0) target = $region5
    $region4: #{bert_encode.1} parent=1 // pred_region
      _
    $region5: #{bert_encode.1} parent=1 // pred_fallthru
      _
    // Predicated region
    $region6: #{bert_encode.1} parent=1 // pred_check
      _
    $region7: #{bert_encode.1} parent=1 // pred_check_branch
      %25 = sbr.rel (0) target = $region9
    $region8: #{bert_encode.1} parent=1 // pred_region
      _
    $region9: #{bert_encode.1} parent=1 // pred_fallthru
      _
    // Predicated region
    $region10: #{bert_encode.1} parent=1 // pred_check
      _
    $region11: #{bert_encode.1} parent=1 // pred_check_branch
      %27 = sbr.rel (0) target = $region13
    $region12: #{bert_encode.1} parent=1 // pred_region
      _
    $region13: #{bert_encode.1} parent=1 // pred_fallthru
      _
    // Predicated region
    $region14: #{bert_encode.1} parent=1 // pred_check
      _
    $region15: #{bert_encode.1} parent=1 // pred_check_branch
      %29 = sbr.rel (0) target = $region17
    $region16: #{bert_encode.1} parent=1 // pred_region
      _
    $region17: #{bert_encode.1} parent=1 // pred_fallthru
      _
    // Predicated region
    $region18: #{bert_encode.1} parent=1 // pred_check
      _
    $region19: #{bert_encode.1} parent=1 // pred_check_branch
      %31 = sbr.rel (0) target = $region21
    $region20: #{bert_encode.1} parent=1 // pred_region
      _
    $region21: #{bert_encode.1} parent=1 // pred_fallthru
      _
    // Predicated region
    $region22: #{bert_encode.1} parent=1 // pred_check
      _
    $region23: #{bert_encode.1} parent=1 // pred_check_branch
      %33 = sbr.rel (0) target = $region25
    $region24: #{bert_encode.1} parent=1 // pred_region
      _
    $region25: #{bert_encode.1} parent=1 // pred_fallthru
      _
    // Predicated region
    $region26: #{bert_encode.1} parent=1 // pred_check
      _
    $region27: #{bert_encode.1} parent=1 // pred_check_branch
      %35 = sbr.rel (0) target = $region29
    $region28: #{bert_encode.1} parent=1 // pred_region
      _
    $region29: #{bert_encode.1} parent=1 // pred_fallthru
      _
    // Predicated region
    $region30: #{bert_encode.1} parent=1 // pred_check
      _
    $region31: #{bert_encode.1} parent=1 // pred_check_branch
      %37 = sbr.rel (0) target = $region33
    $region32: #{bert_encode.1} parent=1 // pred_region
      _
    $region33: #{bert_encode.1} parent=1 // pred_fallthru
      _
    // Predicated region
    $region34: #{bert_encode.1} parent=1 // pred_check
      _
    $region35: #{bert_encode.1} parent=1 // pred_check_branch
      %39 = sbr.rel (0) target = $region37
    $region36: #{bert_encode.1} parent=1 // pred_region
      _
    $region37: #{bert_encode.1} parent=1 // pred_fallthru
      _
    // Predicated region
    $region38: #{bert_encode.1} parent=1 // pred_check
      _
    $region39: #{bert_encode.1} parent=1 // pred_check_branch
      %41 = sbr.rel (0) target = $region41
    $region40: #{bert_encode.1} parent=1 // pred_region
      _
    $region41: #{bert_encode.1} parent=1 // pred_fallthru
      _
    // Predicated region
    $region42: #{bert_encode.1} parent=1 // pred_check
      _
    $region43: #{bert_encode.1} parent=1 // pred_check_branch
      %43 = sbr.rel (0) target = $region45
    $region44: #{bert_encode.1} parent=1 // pred_region
      _
    $region45: #{bert_encode.1} parent=1 // pred_fallthru
      _
    // Predicated region
    $region46: #{bert_encode.1} parent=1 // pred_check
      _
    $region47: #{bert_encode.1} parent=1 // pred_check_branch
      %45 = sbr.rel (0) target = $region49
    $region48: #{bert_encode.1} parent=1 // pred_region
      _
    $region49: #{bert_encode.1} parent=1 // pred_fallthru
      _
    // Predicated region
    $region50: #{bert_encode.1} parent=1 // pred_check
      _
    $region51: #{bert_encode.1} parent=1 // pred_check_branch
      %47 = sbr.rel (0) target = $region53
    $region52: #{bert_encode.1} parent=1 // pred_region
      _
    $region53: #{bert_encode.1} parent=1 // pred_fallthru
      _
    // Predicated region
    $region54: #{bert_encode.1} parent=1 // pred_check
      _
    $region55: #{bert_encode.1} parent=1 // pred_check_branch
      %49 = sbr.rel (0) target = $region57
    $region56: #{bert_encode.1} parent=1 // pred_region
      _
    $region57: #{bert_encode.1} parent=1 // pred_fallthru
      _
    // Predicated region
    $region58: #{bert_encode.1} parent=1 // pred_check
      _
    $region59: #{bert_encode.1} parent=1 // pred_check_branch
      %51 = sbr.rel (0) target = $region61
    $region60: #{bert_encode.1} parent=1 // pred_region
      _
    $region61: #{bert_encode.1} parent=1 // pred_fallthru
      _
    // Predicated region
    $region62: #{bert_encode.1} parent=1 // pred_check
      _
    $region63: #{bert_encode.1} parent=1 // pred_check_branch
      %53 = sbr.rel (0) target = $region65
    $region64: #{bert_encode.1} parent=1 // pred_region
      _
    $region65: #{bert_encode.1} parent=1 // pred_fallthru
      _
    %v55 = vld [vmem:[%s0] sm:$0xff]
    %v56 = vld [vmem:[%s0 + $0x8] sm:$0xff]
    %v57 = vld [vmem:[%s2] sm:$0x1]
    %v58 = vld [vmem:[%s3] sm:$0x1]
    %vm59 = vcmask 261120
    %v60 = vsel %vm59, %v55, 0.0
    %61 = vadd.xlane.f32.xlu0 %v60
    %v62 = vpop.xlane.xlu0 %61
    %v63 = vsel %vm59, %v56, 0.0
    %64 = vadd.xlane.f32.xlu0 %v63
    %v65 = vpop.xlane.xlu0 %64
    %v66 = vrcp.pop 32.0
    %v67 = vmul.f32 %v62, %v66
    %v68 = vmul.f32 %v65, %v66
    %v69 = vsub.f32 %v55, %v67
    %v70 = vsub.f32 %v56, %v68
    %v71 = vmul.f32 %v69, %v69
    %v72 = vmul.f32 %v70, %v70
    %v73 = vsel %vm59, %v71, 0.0
    %74 = vadd.xlane.f32.xlu0 %v73
    %v75 = vpop.xlane.xlu0 %74
    %v76 = vsel %vm59, %v72, 0.0
    %77 = vadd.xlane.f32.xlu0 %v76
    %v78 = vpop.xlane.xlu0 %77
    %v79 = vmul.f32 %v75, %v66
    %v80 = vmul.f32 %v78, %v66
    %v81 = vadd.f32 %v79, 1e-12
    %v82 = vadd.f32 %v80, 1e-12
    %v83 = vrsqrt.pop %v81
    %v84 = vrsqrt.pop %v82
    %v85 = vmul.f32 %v69, %v83
    %v86 = vmul.f32 %v70, %v84
    %v88 = vlaneseq
    %v89 = vshrl.u32 %v88, 7
    %v90 = vsub.s32 0, %v89
    %v91 = vrot.slane %v57, %v90
    %v93 = vmul.f32 %v85, %v91
    %v94 = vmul.f32 %v86, %v91
    %v96 = vlaneseq
    %v97 = vshrl.u32 %v96, 7
    %v98 = vsub.s32 0, %v97
    %v99 = vrot.slane %v58, %v98
    %v101 = vadd.f32 %v93, %v99
    %v102 = vadd.f32 %v94, %v99
    %v103 = vld [vmem:[%s1] sm:$0x1]
    %v104 = vld [vmem:[%s1 + $0x1] sm:$0x1]
    %v105 = vpack.c.bf16 %v102, %v101
    %v106 = vld [vmem:[%s4] sm:$0xf]
    %v107 = vld [vmem:[%s4 + $0x4] sm:$0xf]
    %v108 = vld [vmem:[%s4 + $0x8] sm:$0xf]
    %v109 = vld [vmem:[%s4 + $0xc] sm:$0xf]
    %v110 = vld [vmem:[%s5] sm:$0x1]
    %v112 = vlaneseq
    %v113 = vshrl.u32 %v112, 7
    %v114 = vsub.s32 0, %v113
    %v115 = vrot.slane %v110, %v114
    %v121 = vunpack.c.l.b16 %v106
    %v122 = vunpack.c.l.b16 %v107
    %v123 = vunpack.c.l.b16 %v108
    %v124 = vunpack.c.l.b16 %v109
    %v125 = vpack.c.b16 %v122, %v121
    %v126 = vpack.c.b16 %v124, %v123
    %v130 = vsel %vm59, %v105, 0
    %132 = vmatprep.subr.bf16.mxu0 0
    %133 = vmatpush1.bf16.msra.mxu0 %v125
    %134 = vmatprep.subr.bf16.mxu0 0
    %135 = vmatpush1.bf16.msra.mxu0 %v126
    %136 = vmatprep.subr.bf16.mxu0 0
    %137 = vmatpush1.bf16.msra.mxu0 0
    %138 = vmatprep.subr.bf16.mxu0 0
    %139 = vmatpush1.bf16.msra.mxu0 0
    %140 = vmatprep.subr.bf16.mxu0 0
    %141 = vmatpush1.bf16.msra.mxu0 0
    %142 = vmatprep.subr.bf16.mxu0 0
    %143 = vmatpush1.bf16.msra.mxu0 0
    %144 = vmatprep.subr.bf16.mxu0 0
    %145 = vmatpush1.bf16.msra.mxu0 0
    %146 = vmatprep.subr.bf16.mxu0 0
    %147 = vmatpush1.bf16.msra.mxu0 0
    %148 = vmatprep.subr.bf16.mxu0 0
    %149 = vmatpush1.bf16.msra.mxu0 0
    %150 = vmatprep.subr.bf16.mxu0 0
    %151 = vmatpush1.bf16.msra.mxu0 0
    %152 = vmatprep.subr.bf16.mxu0 0
    %153 = vmatpush1.bf16.msra.mxu0 0
    %154 = vmatprep.subr.bf16.mxu0 0
    %155 = vmatpush1.bf16.msra.mxu0 0
    %156 = vmatprep.subr.bf16.mxu0 0
    %157 = vmatpush1.bf16.msra.mxu0 0
    %158 = vmatprep.subr.bf16.mxu0 0
    %159 = vmatpush1.bf16.msra.mxu0 0
    %160 = vmatprep.subr.bf16.mxu0 0
    %161 = vmatpush1.bf16.msra.mxu0 0
    %162 = vmatprep.subr.bf16.mxu0 0
    %163 = vmatpush1.bf16.msra.mxu0 0
    %164 = vmatprep.mubr.bf16.mxu0 0
    %165 = vmatmul.mubr.bf16.gmra.mrb[0].mxu0 %v130
    %v166 = vpop.f32.mrb[0].mxu0
    %v167 = vadd.f32 %v115, %v166
    %v168 = vpop.f32.mrb[0].mxu0
    %v169 = vpop.f32.mrb[0].mxu0
    %v170 = vadd.f32 %v115, %v169
    %v171 = vpop.f32.mrb[0].mxu0
    %172 = vdwg.mxu0
    %v173 = vld [vmem:[%s6] sm:$0xf]
    %v174 = vld [vmem:[%s6 + $0x4] sm:$0xf]
    %v175 = vld [vmem:[%s6 + $0x8] sm:$0xf]
    %v176 = vld [vmem:[%s6 + $0xc] sm:$0xf]
    %v177 = vpack.c.bf16 %v167, %v167
    %v178 = vpack.c.bf16 %v170, %v170
    %180 = vrot.lane.b32.xlu0 %v177, 96
    %v181 = vpop.permute.xlu0 %180
    %vm182 = vcmask 130048
    %v184 = vsel %vm182, %v177, 0
    %v187 = vsel %vm182, %v181, 0
    %189 = vmatprep.subr.bf16.mxu0 0
    %190 = vmatpush1.bf16.xpose.msra.mxu0 %v187
    %191 = vmatprep.subr.bf16.mxu0 0
    %192 = vmatpush1.bf16.xpose.msra.mxu0 0
    %193 = vmatprep.subr.bf16.mxu0 0
    %194 = vmatpush1.bf16.xpose.msra.mxu0 0
    %195 = vmatprep.subr.bf16.mxu0 0
    %196 = vmatpush1.bf16.xpose.msra.mxu0 0
    %197 = vmatprep.subr.bf16.mxu0 0
    %198 = vmatpush1.bf16.xpose.msra.mxu0 0
    %199 = vmatprep.subr.bf16.mxu0 0
    %200 = vmatpush1.bf16.xpose.msra.mxu0 0
    %201 = vmatprep.subr.bf16.mxu0 0
    %202 = vmatpush1.bf16.xpose.msra.mxu0 0
    %203 = vmatprep.subr.bf16.mxu0 0
    %204 = vmatpush1.bf16.xpose.msra.mxu0 0
    %205 = vmatprep.subr.bf16.mxu0 0
    %206 = vmatpush1.bf16.xpose.msra.mxu0 0
    %207 = vmatprep.subr.bf16.mxu0 0
    %208 = vmatpush1.bf16.xpose.msra.mxu0 0
    %209 = vmatprep.subr.bf16.mxu0 0
    %210 = vmatpush1.bf16.xpose.msra.mxu0 0
    %211 = vmatprep.subr.bf16.mxu0 0
    %212 = vmatpush1.bf16.xpose.msra.mxu0 0
    %213 = vmatprep.subr.bf16.mxu0 0
    %214 = vmatpush1.bf16.xpose.msra.mxu0 0
    %215 = vmatprep.subr.bf16.mxu0 0
    %216 = vmatpush1.bf16.xpose.msra.mxu0 0
    %217 = vmatprep.subr.bf16.mxu0 0
    %218 = vmatpush1.bf16.xpose.msra.mxu0 0
    %219 = vmatprep.subr.bf16.mxu0 0
    %220 = vmatpush1.bf16.xpose.msra.mxu0 0
    %221 = vmatprep.mubr.bf16.mxu0 0
    %222 = vmatmul.mubr.bf16.gmra.mrb[0].mxu0 %v184
    %v223 = vpop.f32.mrb[0].mxu0
    %v224 = vadd.f32 0.0, %v223
    %v225 = vpop.f32.mrb[0].mxu0
    %v226 = vpop.f32.mrb[0].mxu0
    %v227 = vpop.f32.mrb[0].mxu0
    %228 = vdwg.mxu0
    %230 = vrot.lane.b32.xlu0 %v178, 96
    %v231 = vpop.permute.xlu0 %230
    %v233 = vsel %vm182, %v178, 0
    %v236 = vsel %vm182, %v231, 0
    %238 = vmatprep.subr.bf16.mxu0 0
    %239 = vmatpush1.bf16.xpose.msra.mxu0 %v236
    %240 = vmatprep.subr.bf16.mxu0 0
    %241 = vmatpush1.bf16.xpose.msra.mxu0 0
    %242 = vmatprep.subr.bf16.mxu0 0
    %243 = vmatpush1.bf16.xpose.msra.mxu0 0
    %244 = vmatprep.subr.bf16.mxu0 0
    %245 = vmatpush1.bf16.xpose.msra.mxu0 0
    %246 = vmatprep.subr.bf16.mxu0 0
    %247 = vmatpush1.bf16.xpose.msra.mxu0 0
    %248 = vmatprep.subr.bf16.mxu0 0
    %249 = vmatpush1.bf16.xpose.msra.mxu0 0
    %250 = vmatprep.subr.bf16.mxu0 0
    %251 = vmatpush1.bf16.xpose.msra.mxu0 0
    %252 = vmatprep.subr.bf16.mxu0 0
    %253 = vmatpush1.bf16.xpose.msra.mxu0 0
    %254 = vmatprep.subr.bf16.mxu0 0
    %255 = vmatpush1.bf16.xpose.msra.mxu0 0
    %256 = vmatprep.subr.bf16.mxu0 0
    %257 = vmatpush1.bf16.xpose.msra.mxu0 0
    %258 = vmatprep.subr.bf16.mxu0 0
    %259 = vmatpush1.bf16.xpose.msra.mxu0 0
    %260 = vmatprep.subr.bf16.mxu0 0
    %261 = vmatpush1.bf16.xpose.msra.mxu0 0
    %262 = vmatprep.subr.bf16.mxu0 0
    %263 = vmatpush1.bf16.xpose.msra.mxu0 0
    %264 = vmatprep.subr.bf16.mxu0 0
    %265 = vmatpush1.bf16.xpose.msra.mxu0 0
    %266 = vmatprep.subr.bf16.mxu0 0
    %267 = vmatpush1.bf16.xpose.msra.mxu0 0
    %268 = vmatprep.subr.bf16.mxu0 0
    %269 = vmatpush1.bf16.xpose.msra.mxu0 0
    %270 = vmatprep.mubr.bf16.mxu0 0
    %271 = vmatmul.mubr.bf16.gmra.mrb[0].mxu0 %v233
    %v272 = vpop.f32.mrb[0].mxu0
    %v273 = vadd.f32 0.0, %v272
    %v274 = vpop.f32.mrb[0].mxu0
    %v275 = vpop.f32.mrb[0].mxu0
    %v276 = vpop.f32.mrb[0].mxu0
    %277 = vdwg.mxu0
    %v278 = vmul.f32 %v224, 0.25
    %v279 = vmul.f32 %v273, 0.25
    %v282 = vlaneseq
    %v283 = vshrl.u32 %v282, 7
    %v284 = vsub.s32 0, %v283
    %v285 = vrot.slane %v103, %v284
    %v286 = vlaneseq
    %v287 = vshrl.u32 %v286, 7
    %v288 = vsub.s32 0, %v287
    %v289 = vrot.slane %v104, %v288
    %v292 = vadd.f32 %v278, %v285
    %v293 = vadd.f32 %v279, %v289
    %vm294 = vcmask 64512
    %v295 = vsel %vm294, %v292, -inf
    %296 = vmax.xlane.f32.xlu0 %v295
    %v297 = vpop.xlane.xlu0 %296
    %v298 = vsel %vm294, %v293, -inf
    %299 = vmax.xlane.f32.xlu0 %v298
    %v300 = vpop.xlane.xlu0 %299
    %v301 = vsub.f32 %v292, %v297
    %v302 = vsub.f32 %v293, %v300
    %v303 = vmul.f32 %v301, 1.442695
    %v304 = vpow.pop %v303
    %v305 = vmul.f32 %v302, 1.442695
    %v306 = vpow.pop %v305
    %v307 = vsel %vm294, %v304, 0.0
    %308 = vadd.xlane.f32.xlu0 %v307
    %v309 = vpop.xlane.xlu0 %308
    %v310 = vsel %vm294, %v306, 0.0
    %311 = vadd.xlane.f32.xlu0 %v310
    %v312 = vpop.xlane.xlu0 %311
    %v313 = vrcp.pop %v309
    %v314 = vrcp.pop %v312
    %v315 = vmul.f32 %v304, %v313
    %v316 = vmul.f32 %v306, %v314
    %v317 = vpack.c.bf16 %v315, %v315
    %v318 = vpack.c.bf16 %v316, %v316
    %319 = vrot.lane.b32.xlu0 %v177, 64
    %v320 = vpop.permute.xlu0 %319
    %v322 = vsel %vm294, %v317, 0
    %vm324 = vcmask 1043456
    %v326 = vsel %vm324, %v320, 0
    %328 = vmatprep.subr.bf16.mxu0 0
    %329 = vmatpush1.bf16.msra.mxu0 %v326
    %330 = vmatprep.subr.bf16.mxu0 0
    %331 = vmatpush1.bf16.msra.mxu0 0
    %332 = vmatprep.subr.bf16.mxu0 0
    %333 = vmatpush1.bf16.msra.mxu0 0
    %334 = vmatprep.subr.bf16.mxu0 0
    %335 = vmatpush1.bf16.msra.mxu0 0
    %336 = vmatprep.subr.bf16.mxu0 0
    %337 = vmatpush1.bf16.msra.mxu0 0
    %338 = vmatprep.subr.bf16.mxu0 0
    %339 = vmatpush1.bf16.msra.mxu0 0
    %340 = vmatprep.subr.bf16.mxu0 0
    %341 = vmatpush1.bf16.msra.mxu0 0
    %342 = vmatprep.subr.bf16.mxu0 0
    %343 = vmatpush1.bf16.msra.mxu0 0
    %344 = vmatprep.subr.bf16.mxu0 0
    %345 = vmatpush1.bf16.msra.mxu0 0
    %346 = vmatprep.subr.bf16.mxu0 0
    %347 = vmatpush1.bf16.msra.mxu0 0
    %348 = vmatprep.subr.bf16.mxu0 0
    %349 = vmatpush1.bf16.msra.mxu0 0
    %350 = vmatprep.subr.bf16.mxu0 0
    %351 = vmatpush1.bf16.msra.mxu0 0
    %352 = vmatprep.subr.bf16.mxu0 0
    %353 = vmatpush1.bf16.msra.mxu0 0
    %354 = vmatprep.subr.bf16.mxu0 0
    %355 = vmatpush1.bf16.msra.mxu0 0
    %356 = vmatprep.subr.bf16.mxu0 0
    %357 = vmatpush1.bf16.msra.mxu0 0
    %358 = vmatprep.subr.bf16.mxu0 0
    %359 = vmatpush1.bf16.msra.mxu0 0
    %360 = vmatprep.mubr.bf16.mxu0 0
    %361 = vmatmul.mubr.bf16.gmra.mrb[0].mxu0 %v322
    %v362 = vpop.f32.mrb[0].mxu0
    %v363 = vadd.f32 0.0, %v362
    %v364 = vpop.f32.mrb[0].mxu0
    %v365 = vpop.f32.mrb[0].mxu0
    %v366 = vpop.f32.mrb[0].mxu0
    %367 = vdwg.mxu0
    %368 = vrot.lane.b32.xlu0 %v178, 64
    %v369 = vpop.permute.xlu0 %368
    %v371 = vsel %vm294, %v318, 0
    %v374 = vsel %vm324, %v369, 0
    %376 = vmatprep.subr.bf16.mxu0 0
    %377 = vmatpush1.bf16.msra.mxu0 %v374
    %378 = vmatprep.subr.bf16.mxu0 0
    %379 = vmatpush1.bf16.msra.mxu0 0
    %380 = vmatprep.subr.bf16.mxu0 0
    %381 = vmatpush1.bf16.msra.mxu0 0
    %382 = vmatprep.subr.bf16.mxu0 0
    %383 = vmatpush1.bf16.msra.mxu0 0
    %384 = vmatprep.subr.bf16.mxu0 0
    %385 = vmatpush1.bf16.msra.mxu0 0
    %386 = vmatprep.subr.bf16.mxu0 0
    %387 = vmatpush1.bf16.msra.mxu0 0
    %388 = vmatprep.subr.bf16.mxu0 0
    %389 = vmatpush1.bf16.msra.mxu0 0
    %390 = vmatprep.subr.bf16.mxu0 0
    %391 = vmatpush1.bf16.msra.mxu0 0
    %392 = vmatprep.subr.bf16.mxu0 0
    %393 = vmatpush1.bf16.msra.mxu0 0
    %394 = vmatprep.subr.bf16.mxu0 0
    %395 = vmatpush1.bf16.msra.mxu0 0
    %396 = vmatprep.subr.bf16.mxu0 0
    %397 = vmatpush1.bf16.msra.mxu0 0
    %398 = vmatprep.subr.bf16.mxu0 0
    %399 = vmatpush1.bf16.msra.mxu0 0
    %400 = vmatprep.subr.bf16.mxu0 0
    %401 = vmatpush1.bf16.msra.mxu0 0
    %402 = vmatprep.subr.bf16.mxu0 0
    %403 = vmatpush1.bf16.msra.mxu0 0
    %404 = vmatprep.subr.bf16.mxu0 0
    %405 = vmatpush1.bf16.msra.mxu0 0
    %406 = vmatprep.subr.bf16.mxu0 0
    %407 = vmatpush1.bf16.msra.mxu0 0
    %408 = vmatprep.mubr.bf16.mxu0 0
    %409 = vmatmul.mubr.bf16.gmra.mrb[0].mxu0 %v371
    %v410 = vpop.f32.mrb[0].mxu0
    %v411 = vadd.f32 0.0, %v410
    %v412 = vpop.f32.mrb[0].mxu0
    %v413 = vpop.f32.mrb[0].mxu0
    %v414 = vpop.f32.mrb[0].mxu0
    %415 = vdwg.mxu0
    %v416 = vpack.c.bf16 %v411, %v363
    %417 = vrot.lane.b32.xlu0 %v177, 112
    %v418 = vpop.permute.xlu0 %417
    %419 = vrot.lane.b32.xlu0 %v177, 80
    %v420 = vpop.permute.xlu0 %419
    %v422 = vsel %vm182, %v418, 0
    %v425 = vsel %vm182, %v420, 0
    %427 = vmatprep.subr.bf16.mxu0 0
    %428 = vmatpush1.bf16.xpose.msra.mxu0 %v425
    %429 = vmatprep.subr.bf16.mxu0 0
    %430 = vmatpush1.bf16.xpose.msra.mxu0 0
    %431 = vmatprep.subr.bf16.mxu0 0
    %432 = vmatpush1.bf16.xpose.msra.mxu0 0
    %433 = vmatprep.subr.bf16.mxu0 0
    %434 = vmatpush1.bf16.xpose.msra.mxu0 0
    %435 = vmatprep.subr.bf16.mxu0 0
    %436 = vmatpush1.bf16.xpose.msra.mxu0 0
    %437 = vmatprep.subr.bf16.mxu0 0
    %438 = vmatpush1.bf16.xpose.msra.mxu0 0
    %439 = vmatprep.subr.bf16.mxu0 0
    %440 = vmatpush1.bf16.xpose.msra.mxu0 0
    %441 = vmatprep.subr.bf16.mxu0 0
    %442 = vmatpush1.bf16.xpose.msra.mxu0 0
    %443 = vmatprep.subr.bf16.mxu0 0
    %444 = vmatpush1.bf16.xpose.msra.mxu0 0
    %445 = vmatprep.subr.bf16.mxu0 0
    %446 = vmatpush1.bf16.xpose.msra.mxu0 0
    %447 = vmatprep.subr.bf16.mxu0 0
    %448 = vmatpush1.bf16.xpose.msra.mxu0 0
    %449 = vmatprep.subr.bf16.mxu0 0
    %450 = vmatpush1.bf16.xpose.msra.mxu0 0
    %451 = vmatprep.subr.bf16.mxu0 0
    %452 = vmatpush1.bf16.xpose.msra.mxu0 0
    %453 = vmatprep.subr.bf16.mxu0 0
    %454 = vmatpush1.bf16.xpose.msra.mxu0 0
    %455 = vmatprep.subr.bf16.mxu0 0
    %456 = vmatpush1.bf16.xpose.msra.mxu0 0
    %457 = vmatprep.subr.bf16.mxu0 0
    %458 = vmatpush1.bf16.xpose.msra.mxu0 0
    %459 = vmatprep.mubr.bf16.mxu0 0
    %460 = vmatmul.mubr.bf16.gmra.mrb[0].mxu0 %v422
    %v461 = vpop.f32.mrb[0].mxu0
    %v462 = vadd.f32 0.0, %v461
    %v463 = vpop.f32.mrb[0].mxu0
    %v464 = vpop.f32.mrb[0].mxu0
    %v465 = vpop.f32.mrb[0].mxu0
    %466 = vdwg.mxu0
    %467 = vrot.lane.b32.xlu0 %v178, 112
    %v468 = vpop.permute.xlu0 %467
    %469 = vrot.lane.b32.xlu0 %v178, 80
    %v470 = vpop.permute.xlu0 %469
    %v472 = vsel %vm182, %v468, 0
    %v475 = vsel %vm182, %v470, 0
    %477 = vmatprep.subr.bf16.mxu0 0
    %478 = vmatpush1.bf16.xpose.msra.mxu0 %v475
    %479 = vmatprep.subr.bf16.mxu0 0
    %480 = vmatpush1.bf16.xpose.msra.mxu0 0
    %481 = vmatprep.subr.bf16.mxu0 0
    %482 = vmatpush1.bf16.xpose.msra.mxu0 0
    %483 = vmatprep.subr.bf16.mxu0 0
    %484 = vmatpush1.bf16.xpose.msra.mxu0 0
    %485 = vmatprep.subr.bf16.mxu0 0
    %486 = vmatpush1.bf16.xpose.msra.mxu0 0
    %487 = vmatprep.subr.bf16.mxu0 0
    %488 = vmatpush1.bf16.xpose.msra.mxu0 0
    %489 = vmatprep.subr.bf16.mxu0 0
    %490 = vmatpush1.bf16.xpose.msra.mxu0 0
    %491 = vmatprep.subr.bf16.mxu0 0
    %492 = vmatpush1.bf16.xpose.msra.mxu0 0
    %493 = vmatprep.subr.bf16.mxu0 0
    %494 = vmatpush1.bf16.xpose.msra.mxu0 0
    %495 = vmatprep.subr.bf16.mxu0 0
    %496 = vmatpush1.bf16.xpose.msra.mxu0 0
    %497 = vmatprep.subr.bf16.mxu0 0
    %498 = vmatpush1.bf16.xpose.msra.mxu0 0
    %499 = vmatprep.subr.bf16.mxu0 0
    %500 = vmatpush1.bf16.xpose.msra.mxu0 0
    %501 = vmatprep.subr.bf16.mxu0 0
    %502 = vmatpush1.bf16.xpose.msra.mxu0 0
    %503 = vmatprep.subr.bf16.mxu0 0
    %504 = vmatpush1.bf16.xpose.msra.mxu0 0
    %505 = vmatprep.subr.bf16.mxu0 0
    %506 = vmatpush1.bf16.xpose.msra.mxu0 0
    %507 = vmatprep.subr.bf16.mxu0 0
    %508 = vmatpush1.bf16.xpose.msra.mxu0 0
    %509 = vmatprep.mubr.bf16.mxu0 0
    %510 = vmatmul.mubr.bf16.gmra.mrb[0].mxu0 %v472
    %v511 = vpop.f32.mrb[0].mxu0
    %v512 = vadd.f32 0.0, %v511
    %v513 = vpop.f32.mrb[0].mxu0
    %v514 = vpop.f32.mrb[0].mxu0
    %v515 = vpop.f32.mrb[0].mxu0
    %516 = vdwg.mxu0
    %v517 = vmul.f32 %v462, 0.25
    %v518 = vmul.f32 %v512, 0.25
    %v519 = vadd.f32 %v517, %v285
    %v520 = vadd.f32 %v518, %v289
    %v521 = vsel %vm294, %v519, -inf
    %522 = vmax.xlane.f32.xlu0 %v521
    %v523 = vpop.xlane.xlu0 %522
    %v524 = vsel %vm294, %v520, -inf
    %525 = vmax.xlane.f32.xlu0 %v524
    %v526 = vpop.xlane.xlu0 %525
    %v527 = vsub.f32 %v519, %v523
    %v528 = vsub.f32 %v520, %v526
    %v529 = vmul.f32 %v527, 1.442695
    %v530 = vpow.pop %v529
    %v531 = vmul.f32 %v528, 1.442695
    %v532 = vpow.pop %v531
    %v533 = vsel %vm294, %v530, 0.0
    %534 = vadd.xlane.f32.xlu0 %v533
    %v535 = vpop.xlane.xlu0 %534
    %v536 = vsel %vm294, %v532, 0.0
    %537 = vadd.xlane.f32.xlu0 %v536
    %v538 = vpop.xlane.xlu0 %537
    %v539 = vrcp.pop %v535
    %v540 = vrcp.pop %v538
    %v541 = vmul.f32 %v530, %v539
    %v542 = vmul.f32 %v532, %v540
    %v543 = vpack.c.bf16 %v541, %v541
    %v544 = vpack.c.bf16 %v542, %v542
    %545 = vrot.lane.b32.xlu0 %v177, 48
    %v546 = vpop.permute.xlu0 %545
    %v548 = vsel %vm294, %v543, 0
    %v551 = vsel %vm324, %v546, 0
    %553 = vmatprep.subr.bf16.mxu0 0
    %554 = vmatpush1.bf16.msra.mxu0 %v551
    %555 = vmatprep.subr.bf16.mxu0 0
    %556 = vmatpush1.bf16.msra.mxu0 0
    %557 = vmatprep.subr.bf16.mxu0 0
    %558 = vmatpush1.bf16.msra.mxu0 0
    %559 = vmatprep.subr.bf16.mxu0 0
    %560 = vmatpush1.bf16.msra.mxu0 0
    %561 = vmatprep.subr.bf16.mxu0 0
    %562 = vmatpush1.bf16.msra.mxu0 0
    %563 = vmatprep.subr.bf16.mxu0 0
    %564 = vmatpush1.bf16.msra.mxu0 0
    %565 = vmatprep.subr.bf16.mxu0 0
    %566 = vmatpush1.bf16.msra.mxu0 0
    %567 = vmatprep.subr.bf16.mxu0 0
    %568 = vmatpush1.bf16.msra.mxu0 0
    %569 = vmatprep.subr.bf16.mxu0 0
    %570 = vmatpush1.bf16.msra.mxu0 0
    %571 = vmatprep.subr.bf16.mxu0 0
    %572 = vmatpush1.bf16.msra.mxu0 0
    %573 = vmatprep.subr.bf16.mxu0 0
    %574 = vmatpush1.bf16.msra.mxu0 0
    %575 = vmatprep.subr.bf16.mxu0 0
    %576 = vmatpush1.bf16.msra.mxu0 0
    %577 = vmatprep.subr.bf16.mxu0 0
    %578 = vmatpush1.bf16.msra.mxu0 0
    %579 = vmatprep.subr.bf16.mxu0 0
    %580 = vmatpush1.bf16.msra.mxu0 0
    %581 = vmatprep.subr.bf16.mxu0 0
    %582 = vmatpush1.bf16.msra.mxu0 0
    %583 = vmatprep.subr.bf16.mxu0 0
    %584 = vmatpush1.bf16.msra.mxu0 0
    %585 = vmatprep.mubr.bf16.mxu0 0
    %586 = vmatmul.mubr.bf16.gmra.mrb[0].mxu0 %v548
    %v587 = vpop.f32.mrb[0].mxu0
    %v588 = vadd.f32 0.0, %v587
    %v589 = vpop.f32.mrb[0].mxu0
    %v590 = vpop.f32.mrb[0].mxu0
    %v591 = vpop.f32.mrb[0].mxu0
    %592 = vdwg.mxu0
    %593 = vrot.lane.b32.xlu0 %v178, 48
    %v594 = vpop.permute.xlu0 %593
    %v596 = vsel %vm294, %v544, 0
    %v599 = vsel %vm324, %v594, 0
    %601 = vmatprep.subr.bf16.mxu0 0
    %602 = vmatpush1.bf16.msra.mxu0 %v599
    %603 = vmatprep.subr.bf16.mxu0 0
    %604 = vmatpush1.bf16.msra.mxu0 0
    %605 = vmatprep.subr.bf16.mxu0 0
    %606 = vmatpush1.bf16.msra.mxu0 0
    %607 = vmatprep.subr.bf16.mxu0 0
    %608 = vmatpush1.bf16.msra.mxu0 0
    %609 = vmatprep.subr.bf16.mxu0 0
    %610 = vmatpush1.bf16.msra.mxu0 0
    %611 = vmatprep.subr.bf16.mxu0 0
    %612 = vmatpush1.bf16.msra.mxu0 0
    %613 = vmatprep.subr.bf16.mxu0 0
    %614 = vmatpush1.bf16.msra.mxu0 0
    %615 = vmatprep.subr.bf16.mxu0 0
    %616 = vmatpush1.bf16.msra.mxu0 0
    %617 = vmatprep.subr.bf16.mxu0 0
    %618 = vmatpush1.bf16.msra.mxu0 0
    %619 = vmatprep.subr.bf16.mxu0 0
    %620 = vmatpush1.bf16.msra.mxu0 0
    %621 = vmatprep.subr.bf16.mxu0 0
    %622 = vmatpush1.bf16.msra.mxu0 0
    %623 = vmatprep.subr.bf16.mxu0 0
    %624 = vmatpush1.bf16.msra.mxu0 0
    %625 = vmatprep.subr.bf16.mxu0 0
    %626 = vmatpush1.bf16.msra.mxu0 0
    %627 = vmatprep.subr.bf16.mxu0 0
    %628 = vmatpush1.bf16.msra.mxu0 0
    %629 = vmatprep.subr.bf16.mxu0 0
    %630 = vmatpush1.bf16.msra.mxu0 0
    %631 = vmatprep.subr.bf16.mxu0 0
    %632 = vmatpush1.bf16.msra.mxu0 0
    %633 = vmatprep.mubr.bf16.mxu0 0
    %634 = vmatmul.mubr.bf16.gmra.mrb[0].mxu0 %v596
    %v635 = vpop.f32.mrb[0].mxu0
    %v636 = vadd.f32 0.0, %v635
    %v637 = vpop.f32.mrb[0].mxu0
    %v638 = vpop.f32.mrb[0].mxu0
    %v639 = vpop.f32.mrb[0].mxu0
    %640 = vdwg.mxu0
    %v641 = vpack.c.bf16 %v636, %v588
    %v644 = vunpack.c.l.b16 %v175
    %v645 = vunpack.c.l.b16 %v176
    %v646 = vpack.c.b16 %v645, %v644
    %v649 = vsel %vm182, %v641, 0
    %651 = vmatprep.subr.bf16.mxu0 0
    %652 = vmatpush1.bf16.msra.mxu0 %v646
    %653 = vmatprep.subr.bf16.mxu0 0
    %654 = vmatpush1.bf16.msra.mxu0 0
    %655 = vmatprep.subr.bf16.mxu0 0
    %656 = vmatpush1.bf16.msra.mxu0 0
    %657 = vmatprep.subr.bf16.mxu0 0
    %658 = vmatpush1.bf16.msra.mxu0 0
    %659 = vmatprep.subr.bf16.mxu0 0
    %660 = vmatpush1.bf16.msra.mxu0 0
    %661 = vmatprep.subr.bf16.mxu0 0
    %662 = vmatpush1.bf16.msra.mxu0 0
    %663 = vmatprep.subr.bf16.mxu0 0
    %664 = vmatpush1.bf16.msra.mxu0 0
    %665 = vmatprep.subr.bf16.mxu0 0
    %666 = vmatpush1.bf16.msra.mxu0 0
    %667 = vmatprep.subr.bf16.mxu0 0
    %668 = vmatpush1.bf16.msra.mxu0 0
    %669 = vmatprep.subr.bf16.mxu0 0
    %670 = vmatpush1.bf16.msra.mxu0 0
    %671 = vmatprep.subr.bf16.mxu0 0
    %672 = vmatpush1.bf16.msra.mxu0 0
    %673 = vmatprep.subr.bf16.mxu0 0
    %674 = vmatpush1.bf16.msra.mxu0 0
    %675 = vmatprep.subr.bf16.mxu0 0
    %676 = vmatpush1.bf16.msra.mxu0 0
    %677 = vmatprep.subr.bf16.mxu0 0
    %678 = vmatpush1.bf16.msra.mxu0 0
    %679 = vmatprep.subr.bf16.mxu0 0
    %680 = vmatpush1.bf16.msra.mxu0 0
    %681 = vmatprep.subr.bf16.mxu0 0
    %682 = vmatpush1.bf16.msra.mxu0 0
    %683 = vmatprep.mubr.bf16.mxu0 0
    %684 = vmatmul.mubr.bf16.gmra.mrb[0].mxu0 %v649
    %v685 = vpop.f32.mrb[0].mxu0
    %v686 = vadd.f32 0.0, %v685
    %v687 = vpop.f32.mrb[0].mxu0
    %v688 = vpop.f32.mrb[0].mxu0
    %v689 = vadd.f32 0.0, %v688
    %v690 = vpop.f32.mrb[0].mxu0
    %691 = vdwg.mxu0
    %v694 = vunpack.c.l.b16 %v173
    %v695 = vunpack.c.l.b16 %v174
    %v696 = vpack.c.b16 %v695, %v694
    %v699 = vsel %vm182, %v416, 0
    %701 = vmatprep.subr.bf16.mxu0 0
    %702 = vmatpush1.bf16.msra.mxu0 %v696
    %703 = vmatprep.subr.bf16.mxu0 0
    %704 = vmatpush1.bf16.msra.mxu0 0
    %705 = vmatprep.subr.bf16.mxu0 0
    %706 = vmatpush1.bf16.msra.mxu0 0
    %707 = vmatprep.subr.bf16.mxu0 0
    %708 = vmatpush1.bf16.msra.mxu0 0
    %709 = vmatprep.subr.bf16.mxu0 0
    %710 = vmatpush1.bf16.msra.mxu0 0
    %711 = vmatprep.subr.bf16.mxu0 0
    %712 = vmatpush1.bf16.msra.mxu0 0
    %713 = vmatprep.subr.bf16.mxu0 0
    %714 = vmatpush1.bf16.msra.mxu0 0
    %715 = vmatprep.subr.bf16.mxu0 0
    %716 = vmatpush1.bf16.msra.mxu0 0
    %717 = vmatprep.subr.bf16.mxu0 0
    %718 = vmatpush1.bf16.msra.mxu0 0
    %719 = vmatprep.subr.bf16.mxu0 0
    %720 = vmatpush1.bf16.msra.mxu0 0
    %721 = vmatprep.subr.bf16.mxu0 0
    %722 = vmatpush1.bf16.msra.mxu0 0
    %723 = vmatprep.subr.bf16.mxu0 0
    %724 = vmatpush1.bf16.msra.mxu0 0
    %725 = vmatprep.subr.bf16.mxu0 0
    %726 = vmatpush1.bf16.msra.mxu0 0
    %727 = vmatprep.subr.bf16.mxu0 0
    %728 = vmatpush1.bf16.msra.mxu0 0
    %729 = vmatprep.subr.bf16.mxu0 0
    %730 = vmatpush1.bf16.msra.mxu0 0
    %731 = vmatprep.subr.bf16.mxu0 0
    %732 = vmatpush1.bf16.msra.mxu0 0
    %733 = vmatprep.mubr.bf16.mxu0 0
    %734 = vmatmul.mubr.bf16.gmra.mrb[0].mxu0 %v699
    %v735 = vpop.f32.mrb[0].mxu0
    %v736 = vadd.f32 %v686, %v735
    %v737 = vpop.f32.mrb[0].mxu0
    %v738 = vpop.f32.mrb[0].mxu0
    %v739 = vadd.f32 %v689, %v738
    %v740 = vpop.f32.mrb[0].mxu0
    %741 = vdwg.mxu0
    %v742 = vld [vmem:[%s7] sm:$0x1]
    %v744 = vlaneseq
    %v745 = vshrl.u32 %v744, 7
    %v746 = vsub.s32 0, %v745
    %v747 = vrot.slane %v742, %v746
    %v749 = vadd.f32 %v736, %v747
    %v750 = vadd.f32 %v739, %v747
    %v751 = vadd.f32 %v101, %v749
    %v752 = vadd.f32 %v102, %v750
    %v753 = vld [vmem:[%s8] sm:$0x1]
    %v754 = vld [vmem:[%s9] sm:$0x1]
    %v755 = vsel %vm59, %v751, 0.0
    %756 = vadd.xlane.f32.xlu0 %v755
    %v757 = vpop.xlane.xlu0 %756
    %v758 = vsel %vm59, %v752, 0.0
    %759 = vadd.xlane.f32.xlu0 %v758
    %v760 = vpop.xlane.xlu0 %759
    %v761 = vmul.f32 %v757, %v66
    %v762 = vmul.f32 %v760, %v66
    %v763 = vsub.f32 %v751, %v761
    %v764 = vsub.f32 %v752, %v762
    %v765 = vmul.f32 %v763, %v763
    %v766 = vmul.f32 %v764, %v764
    %v767 = vsel %vm59, %v765, 0.0
    %768 = vadd.xlane.f32.xlu0 %v767
    %v769 = vpop.xlane.xlu0 %768
    %v770 = vsel %vm59, %v766, 0.0
    %771 = vadd.xlane.f32.xlu0 %v770
    %v772 = vpop.xlane.xlu0 %771
    %v773 = vmul.f32 %v769, %v66
    %v774 = vmul.f32 %v772, %v66
    %v775 = vadd.f32 %v773, 1e-12
    %v776 = vadd.f32 %v774, 1e-12
    %v777 = vrsqrt.pop %v775
    %v778 = vrsqrt.pop %v776
    %v779 = vmul.f32 %v763, %v777
    %v780 = vmul.f32 %v764, %v778
    %v782 = vlaneseq
    %v783 = vshrl.u32 %v782, 7
    %v784 = vsub.s32 0, %v783
    %v785 = vrot.slane %v753, %v784
    %v787 = vmul.f32 %v779, %v785
    %v788 = vmul.f32 %v780, %v785
    %v790 = vlaneseq
    %v791 = vshrl.u32 %v790, 7
    %v792 = vsub.s32 0, %v791
    %v793 = vrot.slane %v754, %v792
    %v795 = vadd.f32 %v787, %v793
    %v796 = vadd.f32 %v788, %v793
    %v797 = vpack.c.bf16 %v796, %v795
    %v798 = vld [vmem:[%s10] sm:$0xf]
    %v799 = vld [vmem:[%s10 + $0x4] sm:$0xf]
    %v800 = vld [vmem:[%s10 + $0x8] sm:$0xf]
    %v801 = vld [vmem:[%s10 + $0xc] sm:$0xf]
    %v802 = vld [vmem:[%s11] sm:$0x1]
    %v804 = vlaneseq
    %v805 = vshrl.u32 %v804, 7
    %v806 = vsub.s32 0, %v805
    %v807 = vrot.slane %v802, %v806
    %v813 = vunpack.c.l.b16 %v798
    %v814 = vunpack.c.l.b16 %v799
    %v815 = vunpack.c.l.b16 %v800
    %v816 = vunpack.c.l.b16 %v801
    %v817 = vpack.c.b16 %v814, %v813
    %v818 = vpack.c.b16 %v816, %v815
    %v822 = vsel %vm59, %v797, 0
    %824 = vmatprep.subr.bf16.mxu0 0
    %825 = vmatpush1.bf16.msra.mxu0 %v817
    %826 = vmatprep.subr.bf16.mxu0 0
    %827 = vmatpush1.bf16.msra.mxu0 %v818
    %828 = vmatprep.subr.bf16.mxu0 0
    %829 = vmatpush1.bf16.msra.mxu0 0
    %830 = vmatprep.subr.bf16.mxu0 0
    %831 = vmatpush1.bf16.msra.mxu0 0
    %832 = vmatprep.subr.bf16.mxu0 0
    %833 = vmatpush1.bf16.msra.mxu0 0
    %834 = vmatprep.subr.bf16.mxu0 0
    %835 = vmatpush1.bf16.msra.mxu0 0
    %836 = vmatprep.subr.bf16.mxu0 0
    %837 = vmatpush1.bf16.msra.mxu0 0
    %838 = vmatprep.subr.bf16.mxu0 0
    %839 = vmatpush1.bf16.msra.mxu0 0
    %840 = vmatprep.subr.bf16.mxu0 0
    %841 = vmatpush1.bf16.msra.mxu0 0
    %842 = vmatprep.subr.bf16.mxu0 0
    %843 = vmatpush1.bf16.msra.mxu0 0
    %844 = vmatprep.subr.bf16.mxu0 0
    %845 = vmatpush1.bf16.msra.mxu0 0
    %846 = vmatprep.subr.bf16.mxu0 0
    %847 = vmatpush1.bf16.msra.mxu0 0
    %848 = vmatprep.subr.bf16.mxu0 0
    %849 = vmatpush1.bf16.msra.mxu0 0
    %850 = vmatprep.subr.bf16.mxu0 0
    %851 = vmatpush1.bf16.msra.mxu0 0
    %852 = vmatprep.subr.bf16.mxu0 0
    %853 = vmatpush1.bf16.msra.mxu0 0
    %854 = vmatprep.subr.bf16.mxu0 0
    %855 = vmatpush1.bf16.msra.mxu0 0
    %856 = vmatprep.mubr.bf16.mxu0 0
    %857 = vmatmul.mubr.bf16.gmra.mrb[0].mxu0 %v822
    %v858 = vpop.f32.mrb[0].mxu0
    %v859 = vadd.f32 %v807, %v858
    %v860 = vpop.f32.mrb[0].mxu0
    %v861 = vpop.f32.mrb[0].mxu0
    %v862 = vadd.f32 %v807, %v861
    %v863 = vpop.f32.mrb[0].mxu0
    %864 = vdwg.mxu0
    %v865 = vmul.f32 %v859, 0.5
    %v866 = vmul.f32 %v862, 0.5
    %v867 = vmul.f32 %v859, 0.70710677
    %v868 = vmul.f32 %v862, 0.70710677
    %v869 = vand.u32 2147483647, %v867
    %v870 = vand.u32 2147483647, %v868
    %v871 = vmul.f32 %v869, 0.3275911
    %v872 = vmul.f32 %v870, 0.3275911
    %v873 = vadd.f32 %v871, 1.0
    %v874 = vadd.f32 %v872, 1.0
    %v875 = vrcp.pop %v873
    %v876 = vmul.f32 1.0, %v875
    %v877 = vrcp.pop %v874
    %v878 = vmul.f32 1.0, %v877
    %v879 = vmul.f32 %v876, 1.0614054
    %v880 = vmul.f32 %v878, 1.0614054
    %v881 = vadd.f32 %v879, -1.4531521
    %v882 = vadd.f32 %v880, -1.4531521
    %v883 = vmul.f32 %v881, %v876
    %v884 = vmul.f32 %v882, %v878
    %v885 = vadd.f32 %v883, 1.4214138
    %v886 = vadd.f32 %v884, 1.4214138
    %v887 = vmul.f32 %v885, %v876
    %v888 = vmul.f32 %v886, %v878
    %v889 = vadd.f32 %v887, -0.28449672
    %v890 = vadd.f32 %v888, -0.28449672
    %v891 = vmul.f32 %v889, %v876
    %v892 = vmul.f32 %v890, %v878
    %v893 = vadd.f32 %v891, 0.2548296
    %v894 = vadd.f32 %v892, 0.2548296
    %v895 = vmul.f32 %v893, %v876
    %v896 = vmul.f32 %v894, %v878
    %v897 = vmul.f32 %v869, %v869
    %v898 = vmul.f32 %v870, %v870
    %v899 = vsub.f32 0.0, %v897
    %v900 = vsub.f32 0.0, %v898
    %v901 = vmul.f32 %v899, 1.442695
    %v902 = vpow.pop %v901
    %v903 = vmul.f32 %v900, 1.442695
    %v904 = vpow.pop %v903
    %v905 = vmul.f32 %v895, %v902
    %v906 = vmul.f32 %v896, %v904
    %v907 = vsub.f32 1.0, %v905
    %v908 = vsub.f32 1.0, %v906
    %vm909 = vcmp.ge.f32.partialorder %v867, 0.0
    %vm910 = vcmp.ge.f32.partialorder %v868, 0.0
    %v911 = vsub.f32 0.0, %v907
    %v912 = vsub.f32 0.0, %v908
    %v913 = vsel %vm909, %v907, %v911
    %v914 = vsel %vm910, %v908, %v912
    %v915 = vadd.f32 %v913, 1.0
    %v916 = vadd.f32 %v914, 1.0
    %v917 = vmul.f32 %v865, %v915
    %v918 = vmul.f32 %v866, %v916
    %v919 = vpack.c.bf16 %v918, %v917
    %v920 = vld [vmem:[%s12] sm:$0xf]
    %v921 = vld [vmem:[%s12 + $0x4] sm:$0xf]
    %v922 = vld [vmem:[%s12 + $0x8] sm:$0xf]
    %v923 = vld [vmem:[%s12 + $0xc] sm:$0xf]
    %v924 = vld [vmem:[%s12 + $0x10] sm:$0xf]
    %v925 = vld [vmem:[%s12 + $0x14] sm:$0xf]
    %v926 = vld [vmem:[%s12 + $0x18] sm:$0xf]
    %v927 = vld [vmem:[%s12 + $0x1c] sm:$0xf]
    %v928 = vld [vmem:[%s13] sm:$0x1]
    %v930 = vlaneseq
    %v931 = vshrl.u32 %v930, 7
    %v932 = vsub.s32 0, %v931
    %v933 = vrot.slane %v928, %v932
    %v943 = vunpack.c.l.b16 %v920
    %v944 = vunpack.c.l.b16 %v921
    %v945 = vunpack.c.l.b16 %v922
    %v946 = vunpack.c.l.b16 %v923
    %v947 = vunpack.c.l.b16 %v924
    %v948 = vunpack.c.l.b16 %v925
    %v949 = vunpack.c.l.b16 %v926
    %v950 = vunpack.c.l.b16 %v927
    %v951 = vpack.c.b16 %v944, %v943
    %v952 = vpack.c.b16 %v946, %v945
    %v953 = vpack.c.b16 %v948, %v947
    %v954 = vpack.c.b16 %v950, %v949
    %vm959 = vcmask 523264
    %v961 = vsel %vm959, %v919, 0
    %963 = vmatprep.subr.bf16.mxu0 0
    %964 = vmatpush1.bf16.msra.mxu0 %v951
    %965 = vmatprep.subr.bf16.mxu0 0
    %966 = vmatpush1.bf16.msra.mxu0 %v952
    %967 = vmatprep.subr.bf16.mxu0 0
    %968 = vmatpush1.bf16.msra.mxu0 %v953
    %969 = vmatprep.subr.bf16.mxu0 0
    %970 = vmatpush1.bf16.msra.mxu0 %v954
    %971 = vmatprep.subr.bf16.mxu0 0
    %972 = vmatpush1.bf16.msra.mxu0 0
    %973 = vmatprep.subr.bf16.mxu0 0
    %974 = vmatpush1.bf16.msra.mxu0 0
    %975 = vmatprep.subr.bf16.mxu0 0
    %976 = vmatpush1.bf16.msra.mxu0 0
    %977 = vmatprep.subr.bf16.mxu0 0
    %978 = vmatpush1.bf16.msra.mxu0 0
    %979 = vmatprep.subr.bf16.mxu0 0
    %980 = vmatpush1.bf16.msra.mxu0 0
    %981 = vmatprep.subr.bf16.mxu0 0
    %982 = vmatpush1.bf16.msra.mxu0 0
    %983 = vmatprep.subr.bf16.mxu0 0
    %984 = vmatpush1.bf16.msra.mxu0 0
    %985 = vmatprep.subr.bf16.mxu0 0
    %986 = vmatpush1.bf16.msra.mxu0 0
    %987 = vmatprep.subr.bf16.mxu0 0
    %988 = vmatpush1.bf16.msra.mxu0 0
    %989 = vmatprep.subr.bf16.mxu0 0
    %990 = vmatpush1.bf16.msra.mxu0 0
    %991 = vmatprep.subr.bf16.mxu0 0
    %992 = vmatpush1.bf16.msra.mxu0 0
    %993 = vmatprep.subr.bf16.mxu0 0
    %994 = vmatpush1.bf16.msra.mxu0 0
    %995 = vmatprep.mubr.bf16.mxu0 0
    %996 = vmatmul.mubr.bf16.gmra.mrb[0].mxu0 %v961
    %v997 = vpop.f32.mrb[0].mxu0
    %v998 = vadd.f32 %v933, %v997
    %v999 = vpop.f32.mrb[0].mxu0
    %v1000 = vpop.f32.mrb[0].mxu0
    %v1001 = vadd.f32 %v933, %v1000
    %v1002 = vpop.f32.mrb[0].mxu0
    %1003 = vdwg.mxu0
    %v1004 = vadd.f32 %v795, %v998
    %v1005 = vadd.f32 %v796, %v1001
    %v1006 = vld [vmem:[%s14] sm:$0x1]
    %v1007 = vld [vmem:[%s15] sm:$0x1]
    %v1008 = vsel %vm59, %v1004, 0.0
    %1009 = vadd.xlane.f32.xlu0 %v1008
    %v1010 = vpop.xlane.xlu0 %1009
    %v1011 = vsel %vm59, %v1005, 0.0
    %1012 = vadd.xlane.f32.xlu0 %v1011
    %v1013 = vpop.xlane.xlu0 %1012
    %v1014 = vmul.f32 %v1010, %v66
    %v1015 = vmul.f32 %v1013, %v66
    %v1016 = vsub.f32 %v1004, %v1014
    %v1017 = vsub.f32 %v1005, %v1015
    %v1018 = vmul.f32 %v1016, %v1016
    %v1019 = vmul.f32 %v1017, %v1017
    %v1020 = vsel %vm59, %v1018, 0.0
    %1021 = vadd.xlane.f32.xlu0 %v1020
    %v1022 = vpop.xlane.xlu0 %1021
    %v1023 = vsel %vm59, %v1019, 0.0
    %1024 = vadd.xlane.f32.xlu0 %v1023
    %v1025 = vpop.xlane.xlu0 %1024
    %v1026 = vmul.f32 %v1022, %v66
    %v1027 = vmul.f32 %v1025, %v66
    %v1028 = vadd.f32 %v1026, 1e-12
    %v1029 = vadd.f32 %v1027, 1e-12
    %v1030 = vrsqrt.pop %v1028
    %v1031 = vrsqrt.pop %v1029
    %v1032 = vmul.f32 %v1016, %v1030
    %v1033 = vmul.f32 %v1017, %v1031
    %v1035 = vlaneseq
    %v1036 = vshrl.u32 %v1035, 7
    %v1037 = vsub.s32 0, %v1036
    %v1038 = vrot.slane %v1006, %v1037
    %v1040 = vmul.f32 %v1032, %v1038
    %v1041 = vmul.f32 %v1033, %v1038
    %v1043 = vlaneseq
    %v1044 = vshrl.u32 %v1043, 7
    %v1045 = vsub.s32 0, %v1044
    %v1046 = vrot.slane %v1007, %v1045
    %v1048 = vadd.f32 %v1040, %v1046
    %v1049 = vadd.f32 %v1041, %v1046
    %v1050 = vpack.c.bf16 %v1049, %v1048
    %s1051 = scalar_lea.vmem %s4, 16
    %v1052 = vld [vmem:[%s1051] sm:$0xf]
    %v1053 = vld [vmem:[%s1051 + $0x4] sm:$0xf]
    %v1054 = vld [vmem:[%s1051 + $0x8] sm:$0xf]
    %v1055 = vld [vmem:[%s1051 + $0xc] sm:$0xf]
    %s1056 = scalar_lea.vmem %s5, 1
    %v1057 = vld [vmem:[%s1056] sm:$0x1]
    %v1059 = vlaneseq
    %v1060 = vshrl.u32 %v1059, 7
    %v1061 = vsub.s32 0, %v1060
    %v1062 = vrot.slane %v1057, %v1061
    %v1068 = vunpack.c.l.b16 %v1052
    %v1069 = vunpack.c.l.b16 %v1053
    %v1070 = vunpack.c.l.b16 %v1054
    %v1071 = vunpack.c.l.b16 %v1055
    %v1072 = vpack.c.b16 %v1069, %v1068
    %v1073 = vpack.c.b16 %v1071, %v1070
    %v1077 = vsel %vm59, %v1050, 0
    %1079 = vmatprep.subr.bf16.mxu0 0
    %1080 = vmatpush1.bf16.msra.mxu0 %v1072
    %1081 = vmatprep.subr.bf16.mxu0 0
    %1082 = vmatpush1.bf16.msra.mxu0 %v1073
    %1083 = vmatprep.subr.bf16.mxu0 0
    %1084 = vmatpush1.bf16.msra.mxu0 0
    %1085 = vmatprep.subr.bf16.mxu0 0
    %1086 = vmatpush1.bf16.msra.mxu0 0
    %1087 = vmatprep.subr.bf16.mxu0 0
    %1088 = vmatpush1.bf16.msra.mxu0 0
    %1089 = vmatprep.subr.bf16.mxu0 0
    %1090 = vmatpush1.bf16.msra.mxu0 0
    %1091 = vmatprep.subr.bf16.mxu0 0
    %1092 = vmatpush1.bf16.msra.mxu0 0
    %1093 = vmatprep.subr.bf16.mxu0 0
    %1094 = vmatpush1.bf16.msra.mxu0 0
    %1095 = vmatprep.subr.bf16.mxu0 0
    %1096 = vmatpush1.bf16.msra.mxu0 0
    %1097 = vmatprep.subr.bf16.mxu0 0
    %1098 = vmatpush1.bf16.msra.mxu0 0
    %1099 = vmatprep.subr.bf16.mxu0 0
    %1100 = vmatpush1.bf16.msra.mxu0 0
    %1101 = vmatprep.subr.bf16.mxu0 0
    %1102 = vmatpush1.bf16.msra.mxu0 0
    %1103 = vmatprep.subr.bf16.mxu0 0
    %1104 = vmatpush1.bf16.msra.mxu0 0
    %1105 = vmatprep.subr.bf16.mxu0 0
    %1106 = vmatpush1.bf16.msra.mxu0 0
    %1107 = vmatprep.subr.bf16.mxu0 0
    %1108 = vmatpush1.bf16.msra.mxu0 0
    %1109 = vmatprep.subr.bf16.mxu0 0
    %1110 = vmatpush1.bf16.msra.mxu0 0
    %1111 = vmatprep.mubr.bf16.mxu0 0
    %1112 = vmatmul.mubr.bf16.gmra.mrb[0].mxu0 %v1077
    %v1113 = vpop.f32.mrb[0].mxu0
    %v1114 = vadd.f32 %v1062, %v1113
    %v1115 = vpop.f32.mrb[0].mxu0
    %v1116 = vpop.f32.mrb[0].mxu0
    %v1117 = vadd.f32 %v1062, %v1116
    %v1118 = vpop.f32.mrb[0].mxu0
    %1119 = vdwg.mxu0
    %s1120 = scalar_lea.vmem %s6, 16
    %v1121 = vld [vmem:[%s1120] sm:$0xf]
    %v1122 = vld [vmem:[%s1120 + $0x4] sm:$0xf]
    %v1123 = vld [vmem:[%s1120 + $0x8] sm:$0xf]
    %v1124 = vld [vmem:[%s1120 + $0xc] sm:$0xf]
    %v1125 = vpack.c.bf16 %v1114, %v1114
    %v1126 = vpack.c.bf16 %v1117, %v1117
    %1128 = vrot.lane.b32.xlu0 %v1125, 96
    %v1129 = vpop.permute.xlu0 %1128
    %v1131 = vsel %vm182, %v1125, 0
    %v1134 = vsel %vm182, %v1129, 0
    %1136 = vmatprep.subr.bf16.mxu0 0
    %1137 = vmatpush1.bf16.xpose.msra.mxu0 %v1134
    %1138 = vmatprep.subr.bf16.mxu0 0
    %1139 = vmatpush1.bf16.xpose.msra.mxu0 0
    %1140 = vmatprep.subr.bf16.mxu0 0
    %1141 = vmatpush1.bf16.xpose.msra.mxu0 0
    %1142 = vmatprep.subr.bf16.mxu0 0
    %1143 = vmatpush1.bf16.xpose.msra.mxu0 0
    %1144 = vmatprep.subr.bf16.mxu0 0
    %1145 = vmatpush1.bf16.xpose.msra.mxu0 0
    %1146 = vmatprep.subr.bf16.mxu0 0
    %1147 = vmatpush1.bf16.xpose.msra.mxu0 0
    %1148 = vmatprep.subr.bf16.mxu0 0
    %1149 = vmatpush1.bf16.xpose.msra.mxu0 0
    %1150 = vmatprep.subr.bf16.mxu0 0
    %1151 = vmatpush1.bf16.xpose.msra.mxu0 0
    %1152 = vmatprep.subr.bf16.mxu0 0
    %1153 = vmatpush1.bf16.xpose.msra.mxu0 0
    %1154 = vmatprep.subr.bf16.mxu0 0
    %1155 = vmatpush1.bf16.xpose.msra.mxu0 0
    %1156 = vmatprep.subr.bf16.mxu0 0
    %1157 = vmatpush1.bf16.xpose.msra.mxu0 0
    %1158 = vmatprep.subr.bf16.mxu0 0
    %1159 = vmatpush1.bf16.xpose.msra.mxu0 0
    %1160 = vmatprep.subr.bf16.mxu0 0
    %1161 = vmatpush1.bf16.xpose.msra.mxu0 0
    %1162 = vmatprep.subr.bf16.mxu0 0
    %1163 = vmatpush1.bf16.xpose.msra.mxu0 0
    %1164 = vmatprep.subr.bf16.mxu0 0
    %1165 = vmatpush1.bf16.xpose.msra.mxu0 0
    %1166 = vmatprep.subr.bf16.mxu0 0
    %1167 = vmatpush1.bf16.xpose.msra.mxu0 0
    %1168 = vmatprep.mubr.bf16.mxu0 0
    %1169 = vmatmul.mubr.bf16.gmra.mrb[0].mxu0 %v1131
    %v1170 = vpop.f32.mrb[0].mxu0
    %v1171 = vadd.f32 0.0, %v1170
    %v1172 = vpop.f32.mrb[0].mxu0
    %v1173 = vpop.f32.mrb[0].mxu0
    %v1174 = vpop.f32.mrb[0].mxu0
    %1175 = vdwg.mxu0
    %1177 = vrot.lane.b32.xlu0 %v1126, 96
    %v1178 = vpop.permute.xlu0 %1177
    %v1180 = vsel %vm182, %v1126, 0
    %v1183 = vsel %vm182, %v1178, 0
    %1185 = vmatprep.subr.bf16.mxu0 0
    %1186 = vmatpush1.bf16.xpose.msra.mxu0 %v1183
    %1187 = vmatprep.subr.bf16.mxu0 0
    %1188 = vmatpush1.bf16.xpose.msra.mxu0 0
    %1189 = vmatprep.subr.bf16.mxu0 0
    %1190 = vmatpush1.bf16.xpose.msra.mxu0 0
    %1191 = vmatprep.subr.bf16.mxu0 0
    %1192 = vmatpush1.bf16.xpose.msra.mxu0 0
    %1193 = vmatprep.subr.bf16.mxu0 0
    %1194 = vmatpush1.bf16.xpose.msra.mxu0 0
    %1195 = vmatprep.subr.bf16.mxu0 0
    %1196 = vmatpush1.bf16.xpose.msra.mxu0 0
    %1197 = vmatprep.subr.bf16.mxu0 0
    %1198 = vmatpush1.bf16.xpose.msra.mxu0 0
    %1199 = vmatprep.subr.bf16.mxu0 0
    %1200 = vmatpush1.bf16.xpose.msra.mxu0 0
    %1201 = vmatprep.subr.bf16.mxu0 0
    %1202 = vmatpush1.bf16.xpose.msra.mxu0 0
    %1203 = vmatprep.subr.bf16.mxu0 0
    %1204 = vmatpush1.bf16.xpose.msra.mxu0 0
    %1205 = vmatprep.subr.bf16.mxu0 0
    %1206 = vmatpush1.bf16.xpose.msra.mxu0 0
    %1207 = vmatprep.subr.bf16.mxu0 0
    %1208 = vmatpush1.bf16.xpose.msra.mxu0 0
    %1209 = vmatprep.subr.bf16.mxu0 0
    %1210 = vmatpush1.bf16.xpose.msra.mxu0 0
    %1211 = vmatprep.subr.bf16.mxu0 0
    %1212 = vmatpush1.bf16.xpose.msra.mxu0 0
    %1213 = vmatprep.subr.bf16.mxu0 0
    %1214 = vmatpush1.bf16.xpose.msra.mxu0 0
    %1215 = vmatprep.subr.bf16.mxu0 0
    %1216 = vmatpush1.bf16.xpose.msra.mxu0 0
    %1217 = vmatprep.mubr.bf16.mxu0 0
    %1218 = vmatmul.mubr.bf16.gmra.mrb[0].mxu0 %v1180
    %v1219 = vpop.f32.mrb[0].mxu0
    %v1220 = vadd.f32 0.0, %v1219
    %v1221 = vpop.f32.mrb[0].mxu0
    %v1222 = vpop.f32.mrb[0].mxu0
    %v1223 = vpop.f32.mrb[0].mxu0
    %1224 = vdwg.mxu0
    %v1225 = vmul.f32 %v1171, 0.25
    %v1226 = vmul.f32 %v1220, 0.25
    %v1227 = vadd.f32 %v1225, %v285
    %v1228 = vadd.f32 %v1226, %v289
    %v1229 = vsel %vm294, %v1227, -inf
    %1230 = vmax.xlane.f32.xlu0 %v1229
    %v1231 = vpop.xlane.xlu0 %1230
    %v1232 = vsel %vm294, %v1228, -inf
    %1233 = vmax.xlane.f32.xlu0 %v1232
    %v1234 = vpop.xlane.xlu0 %1233
    %v1235 = vsub.f32 %v1227, %v1231
    %v1236 = vsub.f32 %v1228, %v1234
    %v1237 = vmul.f32 %v1235, 1.442695
    %v1238 = vpow.pop %v1237
    %v1239 = vmul.f32 %v1236, 1.442695
    %v1240 = vpow.pop %v1239
    %v1241 = vsel %vm294, %v1238, 0.0
    %1242 = vadd.xlane.f32.xlu0 %v1241
    %v1243 = vpop.xlane.xlu0 %1242
    %v1244 = vsel %vm294, %v1240, 0.0
    %1245 = vadd.xlane.f32.xlu0 %v1244
    %v1246 = vpop.xlane.xlu0 %1245
    %v1247 = vrcp.pop %v1243
    %v1248 = vrcp.pop %v1246
    %v1249 = vmul.f32 %v1238, %v1247
    %v1250 = vmul.f32 %v1240, %v1248
    %v1251 = vpack.c.bf16 %v1249, %v1249
    %v1252 = vpack.c.bf16 %v1250, %v1250
    %1253 = vrot.lane.b32.xlu0 %v1125, 64
    %v1254 = vpop.permute.xlu0 %1253
    %v1256 = vsel %vm294, %v1251, 0
    %v1259 = vsel %vm324, %v1254, 0
    %1261 = vmatprep.subr.bf16.mxu0 0
    %1262 = vmatpush1.bf16.msra.mxu0 %v1259
    %1263 = vmatprep.subr.bf16.mxu0 0
    %1264 = vmatpush1.bf16.msra.mxu0 0
    %1265 = vmatprep.subr.bf16.mxu0 0
    %1266 = vmatpush1.bf16.msra.mxu0 0
    %1267 = vmatprep.subr.bf16.mxu0 0
    %1268 = vmatpush1.bf16.msra.mxu0 0
    %1269 = vmatprep.subr.bf16.mxu0 0
    %1270 = vmatpush1.bf16.msra.mxu0 0
    %1271 = vmatprep.subr.bf16.mxu0 0
    %1272 = vmatpush1.bf16.msra.mxu0 0
    %1273 = vmatprep.subr.bf16.mxu0 0
    %1274 = vmatpush1.bf16.msra.mxu0 0
    %1275 = vmatprep.subr.bf16.mxu0 0
    %1276 = vmatpush1.bf16.msra.mxu0 0
    %1277 = vmatprep.subr.bf16.mxu0 0
    %1278 = vmatpush1.bf16.msra.mxu0 0
    %1279 = vmatprep.subr.bf16.mxu0 0
    %1280 = vmatpush1.bf16.msra.mxu0 0
    %1281 = vmatprep.subr.bf16.mxu0 0
    %1282 = vmatpush1.bf16.msra.mxu0 0
    %1283 = vmatprep.subr.bf16.mxu0 0
    %1284 = vmatpush1.bf16.msra.mxu0 0
    %1285 = vmatprep.subr.bf16.mxu0 0
    %1286 = vmatpush1.bf16.msra.mxu0 0
    %1287 = vmatprep.subr.bf16.mxu0 0
    %1288 = vmatpush1.bf16.msra.mxu0 0
    %1289 = vmatprep.subr.bf16.mxu0 0
    %1290 = vmatpush1.bf16.msra.mxu0 0
    %1291 = vmatprep.subr.bf16.mxu0 0
    %1292 = vmatpush1.bf16.msra.mxu0 0
    %1293 = vmatprep.mubr.bf16.mxu0 0
    %1294 = vmatmul.mubr.bf16.gmra.mrb[0].mxu0 %v1256
    %v1295 = vpop.f32.mrb[0].mxu0
    %v1296 = vadd.f32 0.0, %v1295
    %v1297 = vpop.f32.mrb[0].mxu0
    %v1298 = vpop.f32.mrb[0].mxu0
    %v1299 = vpop.f32.mrb[0].mxu0
    %1300 = vdwg.mxu0
    %1301 = vrot.lane.b32.xlu0 %v1126, 64
    %v1302 = vpop.permute.xlu0 %1301
    %v1304 = vsel %vm294, %v1252, 0
    %v1307 = vsel %vm324, %v1302, 0
    %1309 = vmatprep.subr.bf16.mxu0 0
    %1310 = vmatpush1.bf16.msra.mxu0 %v1307
    %1311 = vmatprep.subr.bf16.mxu0 0
    %1312 = vmatpush1.bf16.msra.mxu0 0
    %1313 = vmatprep.subr.bf16.mxu0 0
    %1314 = vmatpush1.bf16.msra.mxu0 0
    %1315 = vmatprep.subr.bf16.mxu0 0
    %1316 = vmatpush1.bf16.msra.mxu0 0
    %1317 = vmatprep.subr.bf16.mxu0 0
    %1318 = vmatpush1.bf16.msra.mxu0 0
    %1319 = vmatprep.subr.bf16.mxu0 0
    %1320 = vmatpush1.bf16.msra.mxu0 0
    %1321 = vmatprep.subr.bf16.mxu0 0
    %1322 = vmatpush1.bf16.msra.mxu0 0
    %1323 = vmatprep.subr.bf16.mxu0 0
    %1324 = vmatpush1.bf16.msra.mxu0 0
    %1325 = vmatprep.subr.bf16.mxu0 0
    %1326 = vmatpush1.bf16.msra.mxu0 0
    %1327 = vmatprep.subr.bf16.mxu0 0
    %1328 = vmatpush1.bf16.msra.mxu0 0
    %1329 = vmatprep.subr.bf16.mxu0 0
    %1330 = vmatpush1.bf16.msra.mxu0 0
    %1331 = vmatprep.subr.bf16.mxu0 0
    %1332 = vmatpush1.bf16.msra.mxu0 0
    %1333 = vmatprep.subr.bf16.mxu0 0
    %1334 = vmatpush1.bf16.msra.mxu0 0
    %1335 = vmatprep.subr.bf16.mxu0 0
    %1336 = vmatpush1.bf16.msra.mxu0 0
    %1337 = vmatprep.subr.bf16.mxu0 0
    %1338 = vmatpush1.bf16.msra.mxu0 0
    %1339 = vmatprep.subr.bf16.mxu0 0
    %1340 = vmatpush1.bf16.msra.mxu0 0
    %1341 = vmatprep.mubr.bf16.mxu0 0
    %1342 = vmatmul.mubr.bf16.gmra.mrb[0].mxu0 %v1304
    %v1343 = vpop.f32.mrb[0].mxu0
    %v1344 = vadd.f32 0.0, %v1343
    %v1345 = vpop.f32.mrb[0].mxu0
    %v1346 = vpop.f32.mrb[0].mxu0
    %v1347 = vpop.f32.mrb[0].mxu0
    %1348 = vdwg.mxu0
    %v1349 = vpack.c.bf16 %v1344, %v1296
    %1350 = vrot.lane.b32.xlu0 %v1125, 112
    %v1351 = vpop.permute.xlu0 %1350
    %1352 = vrot.lane.b32.xlu0 %v1125, 80
    %v1353 = vpop.permute.xlu0 %1352
    %v1355 = vsel %vm182, %v1351, 0
    %v1358 = vsel %vm182, %v1353, 0
    %1360 = vmatprep.subr.bf16.mxu0 0
    %1361 = vmatpush1.bf16.xpose.msra.mxu0 %v1358
    %1362 = vmatprep.subr.bf16.mxu0 0
    %1363 = vmatpush1.bf16.xpose.msra.mxu0 0
    %1364 = vmatprep.subr.bf16.mxu0 0
    %1365 = vmatpush1.bf16.xpose.msra.mxu0 0
    %1366 = vmatprep.subr.bf16.mxu0 0
    %1367 = vmatpush1.bf16.xpose.msra.mxu0 0
    %1368 = vmatprep.subr.bf16.mxu0 0
    %1369 = vmatpush1.bf16.xpose.msra.mxu0 0
    %1370 = vmatprep.subr.bf16.mxu0 0
    %1371 = vmatpush1.bf16.xpose.msra.mxu0 0
    %1372 = vmatprep.subr.bf16.mxu0 0
    %1373 = vmatpush1.bf16.xpose.msra.mxu0 0
    %1374 = vmatprep.subr.bf16.mxu0 0
    %1375 = vmatpush1.bf16.xpose.msra.mxu0 0
    %1376 = vmatprep.subr.bf16.mxu0 0
    %1377 = vmatpush1.bf16.xpose.msra.mxu0 0
    %1378 = vmatprep.subr.bf16.mxu0 0
    %1379 = vmatpush1.bf16.xpose.msra.mxu0 0
    %1380 = vmatprep.subr.bf16.mxu0 0
    %1381 = vmatpush1.bf16.xpose.msra.mxu0 0
    %1382 = vmatprep.subr.bf16.mxu0 0
    %1383 = vmatpush1.bf16.xpose.msra.mxu0 0
    %1384 = vmatprep.subr.bf16.mxu0 0
    %1385 = vmatpush1.bf16.xpose.msra.mxu0 0
    %1386 = vmatprep.subr.bf16.mxu0 0
    %1387 = vmatpush1.bf16.xpose.msra.mxu0 0
    %1388 = vmatprep.subr.bf16.mxu0 0
    %1389 = vmatpush1.bf16.xpose.msra.mxu0 0
    %1390 = vmatprep.subr.bf16.mxu0 0
    %1391 = vmatpush1.bf16.xpose.msra.mxu0 0
    %1392 = vmatprep.mubr.bf16.mxu0 0
    %1393 = vmatmul.mubr.bf16.gmra.mrb[0].mxu0 %v1355
    %v1394 = vpop.f32.mrb[0].mxu0
    %v1395 = vadd.f32 0.0, %v1394
    %v1396 = vpop.f32.mrb[0].mxu0
    %v1397 = vpop.f32.mrb[0].mxu0
    %v1398 = vpop.f32.mrb[0].mxu0
    %1399 = vdwg.mxu0
    %1400 = vrot.lane.b32.xlu0 %v1126, 112
    %v1401 = vpop.permute.xlu0 %1400
    %1402 = vrot.lane.b32.xlu0 %v1126, 80
    %v1403 = vpop.permute.xlu0 %1402
    %v1405 = vsel %vm182, %v1401, 0
    %v1408 = vsel %vm182, %v1403, 0
    %1410 = vmatprep.subr.bf16.mxu0 0
    %1411 = vmatpush1.bf16.xpose.msra.mxu0 %v1408
    %1412 = vmatprep.subr.bf16.mxu0 0
    %1413 = vmatpush1.bf16.xpose.msra.mxu0 0
    %1414 = vmatprep.subr.bf16.mxu0 0
    %1415 = vmatpush1.bf16.xpose.msra.mxu0 0
    %1416 = vmatprep.subr.bf16.mxu0 0
    %1417 = vmatpush1.bf16.xpose.msra.mxu0 0
    %1418 = vmatprep.subr.bf16.mxu0 0
    %1419 = vmatpush1.bf16.xpose.msra.mxu0 0
    %1420 = vmatprep.subr.bf16.mxu0 0
    %1421 = vmatpush1.bf16.xpose.msra.mxu0 0
    %1422 = vmatprep.subr.bf16.mxu0 0
    %1423 = vmatpush1.bf16.xpose.msra.mxu0 0
    %1424 = vmatprep.subr.bf16.mxu0 0
    %1425 = vmatpush1.bf16.xpose.msra.mxu0 0
    %1426 = vmatprep.subr.bf16.mxu0 0
    %1427 = vmatpush1.bf16.xpose.msra.mxu0 0
    %1428 = vmatprep.subr.bf16.mxu0 0
    %1429 = vmatpush1.bf16.xpose.msra.mxu0 0
    %1430 = vmatprep.subr.bf16.mxu0 0
    %1431 = vmatpush1.bf16.xpose.msra.mxu0 0
    %1432 = vmatprep.subr.bf16.mxu0 0
    %1433 = vmatpush1.bf16.xpose.msra.mxu0 0
    %1434 = vmatprep.subr.bf16.mxu0 0
    %1435 = vmatpush1.bf16.xpose.msra.mxu0 0
    %1436 = vmatprep.subr.bf16.mxu0 0
    %1437 = vmatpush1.bf16.xpose.msra.mxu0 0
    %1438 = vmatprep.subr.bf16.mxu0 0
    %1439 = vmatpush1.bf16.xpose.msra.mxu0 0
    %1440 = vmatprep.subr.bf16.mxu0 0
    %1441 = vmatpush1.bf16.xpose.msra.mxu0 0
    %1442 = vmatprep.mubr.bf16.mxu0 0
    %1443 = vmatmul.mubr.bf16.gmra.mrb[0].mxu0 %v1405
    %v1444 = vpop.f32.mrb[0].mxu0
    %v1445 = vadd.f32 0.0, %v1444
    %v1446 = vpop.f32.mrb[0].mxu0
    %v1447 = vpop.f32.mrb[0].mxu0
    %v1448 = vpop.f32.mrb[0].mxu0
    %1449 = vdwg.mxu0
    %v1450 = vmul.f32 %v1395, 0.25
    %v1451 = vmul.f32 %v1445, 0.25
    %v1452 = vadd.f32 %v1450, %v285
    %v1453 = vadd.f32 %v1451, %v289
    %v1454 = vsel %vm294, %v1452, -inf
    %1455 = vmax.xlane.f32.xlu0 %v1454
    %v1456 = vpop.xlane.xlu0 %1455
    %v1457 = vsel %vm294, %v1453, -inf
    %1458 = vmax.xlane.f32.xlu0 %v1457
    %v1459 = vpop.xlane.xlu0 %1458
    %v1460 = vsub.f32 %v1452, %v1456
    %v1461 = vsub.f32 %v1453, %v1459
    %v1462 = vmul.f32 %v1460, 1.442695
    %v1463 = vpow.pop %v1462
    %v1464 = vmul.f32 %v1461, 1.442695
    %v1465 = vpow.pop %v1464
    %v1466 = vsel %vm294, %v1463, 0.0
    %1467 = vadd.xlane.f32.xlu0 %v1466
    %v1468 = vpop.xlane.xlu0 %1467
    %v1469 = vsel %vm294, %v1465, 0.0
    %1470 = vadd.xlane.f32.xlu0 %v1469
    %v1471 = vpop.xlane.xlu0 %1470
    %v1472 = vrcp.pop %v1468
    %v1473 = vrcp.pop %v1471
    %v1474 = vmul.f32 %v1463, %v1472
    %v1475 = vmul.f32 %v1465, %v1473
    %v1476 = vpack.c.bf16 %v1474, %v1474
    %v1477 = vpack.c.bf16 %v1475, %v1475
    %1478 = vrot.lane.b32.xlu0 %v1125, 48
    %v1479 = vpop.permute.xlu0 %1478
    %v1481 = vsel %vm294, %v1476, 0
    %v1484 = vsel %vm324, %v1479, 0
    %1486 = vmatprep.subr.bf16.mxu0 0
    %1487 = vmatpush1.bf16.msra.mxu0 %v1484
    %1488 = vmatprep.subr.bf16.mxu0 0
    %1489 = vmatpush1.bf16.msra.mxu0 0
    %1490 = vmatprep.subr.bf16.mxu0 0
    %1491 = vmatpush1.bf16.msra.mxu0 0
    %1492 = vmatprep.subr.bf16.mxu0 0
    %1493 = vmatpush1.bf16.msra.mxu0 0
    %1494 = vmatprep.subr.bf16.mxu0 0
    %1495 = vmatpush1.bf16.msra.mxu0 0
    %1496 = vmatprep.subr.bf16.mxu0 0
    %1497 = vmatpush1.bf16.msra.mxu0 0
    %1498 = vmatprep.subr.bf16.mxu0 0
    %1499 = vmatpush1.bf16.msra.mxu0 0
    %1500 = vmatprep.subr.bf16.mxu0 0
    %1501 = vmatpush1.bf16.msra.mxu0 0
    %1502 = vmatprep.subr.bf16.mxu0 0
    %1503 = vmatpush1.bf16.msra.mxu0 0
    %1504 = vmatprep.subr.bf16.mxu0 0
    %1505 = vmatpush1.bf16.msra.mxu0 0
    %1506 = vmatprep.subr.bf16.mxu0 0
    %1507 = vmatpush1.bf16.msra.mxu0 0
    %1508 = vmatprep.subr.bf16.mxu0 0
    %1509 = vmatpush1.bf16.msra.mxu0 0
    %1510 = vmatprep.subr.bf16.mxu0 0
    %1511 = vmatpush1.bf16.msra.mxu0 0
    %1512 = vmatprep.subr.bf16.mxu0 0
    %1513 = vmatpush1.bf16.msra.mxu0 0
    %1514 = vmatprep.subr.bf16.mxu0 0
    %1515 = vmatpush1.bf16.msra.mxu0 0
    %1516 = vmatprep.subr.bf16.mxu0 0
    %1517 = vmatpush1.bf16.msra.mxu0 0
    %1518 = vmatprep.mubr.bf16.mxu0 0
    %1519 = vmatmul.mubr.bf16.gmra.mrb[0].mxu0 %v1481
    %v1520 = vpop.f32.mrb[0].mxu0
    %v1521 = vadd.f32 0.0, %v1520
    %v1522 = vpop.f32.mrb[0].mxu0
    %v1523 = vpop.f32.mrb[0].mxu0
    %v1524 = vpop.f32.mrb[0].mxu0
    %1525 = vdwg.mxu0
    %1526 = vrot.lane.b32.xlu0 %v1126, 48
    %v1527 = vpop.permute.xlu0 %1526
    %v1529 = vsel %vm294, %v1477, 0
    %v1532 = vsel %vm324, %v1527, 0
    %1534 = vmatprep.subr.bf16.mxu0 0
    %1535 = vmatpush1.bf16.msra.mxu0 %v1532
    %1536 = vmatprep.subr.bf16.mxu0 0
    %1537 = vmatpush1.bf16.msra.mxu0 0
    %1538 = vmatprep.subr.bf16.mxu0 0
    %1539 = vmatpush1.bf16.msra.mxu0 0
    %1540 = vmatprep.subr.bf16.mxu0 0
    %1541 = vmatpush1.bf16.msra.mxu0 0
    %1542 = vmatprep.subr.bf16.mxu0 0
    %1543 = vmatpush1.bf16.msra.mxu0 0
    %1544 = vmatprep.subr.bf16.mxu0 0
    %1545 = vmatpush1.bf16.msra.mxu0 0
    %1546 = vmatprep.subr.bf16.mxu0 0
    %1547 = vmatpush1.bf16.msra.mxu0 0
    %1548 = vmatprep.subr.bf16.mxu0 0
    %1549 = vmatpush1.bf16.msra.mxu0 0
    %1550 = vmatprep.subr.bf16.mxu0 0
    %1551 = vmatpush1.bf16.msra.mxu0 0
    %1552 = vmatprep.subr.bf16.mxu0 0
    %1553 = vmatpush1.bf16.msra.mxu0 0
    %1554 = vmatprep.subr.bf16.mxu0 0
    %1555 = vmatpush1.bf16.msra.mxu0 0
    %1556 = vmatprep.subr.bf16.mxu0 0
    %1557 = vmatpush1.bf16.msra.mxu0 0
    %1558 = vmatprep.subr.bf16.mxu0 0
    %1559 = vmatpush1.bf16.msra.mxu0 0
    %1560 = vmatprep.subr.bf16.mxu0 0
    %1561 = vmatpush1.bf16.msra.mxu0 0
    %1562 = vmatprep.subr.bf16.mxu0 0
    %1563 = vmatpush1.bf16.msra.mxu0 0
    %1564 = vmatprep.subr.bf16.mxu0 0
    %1565 = vmatpush1.bf16.msra.mxu0 0
    %1566 = vmatprep.mubr.bf16.mxu0 0
    %1567 = vmatmul.mubr.bf16.gmra.mrb[0].mxu0 %v1529
    %v1568 = vpop.f32.mrb[0].mxu0
    %v1569 = vadd.f32 0.0, %v1568
    %v1570 = vpop.f32.mrb[0].mxu0
    %v1571 = vpop.f32.mrb[0].mxu0
    %v1572 = vpop.f32.mrb[0].mxu0
    %1573 = vdwg.mxu0
    %v1574 = vpack.c.bf16 %v1569, %v1521
    %v1577 = vunpack.c.l.b16 %v1123
    %v1578 = vunpack.c.l.b16 %v1124
    %v1579 = vpack.c.b16 %v1578, %v1577
    %v1582 = vsel %vm182, %v1574, 0
    %1584 = vmatprep.subr.bf16.mxu0 0
    %1585 = vmatpush1.bf16.msra.mxu0 %v1579
    %1586 = vmatprep.subr.bf16.mxu0 0
    %1587 = vmatpush1.bf16.msra.mxu0 0
    %1588 = vmatprep.subr.bf16.mxu0 0
    %1589 = vmatpush1.bf16.msra.mxu0 0
    %1590 = vmatprep.subr.bf16.mxu0 0
    %1591 = vmatpush1.bf16.msra.mxu0 0
    %1592 = vmatprep.subr.bf16.mxu0 0
    %1593 = vmatpush1.bf16.msra.mxu0 0
    %1594 = vmatprep.subr.bf16.mxu0 0
    %1595 = vmatpush1.bf16.msra.mxu0 0
    %1596 = vmatprep.subr.bf16.mxu0 0
    %1597 = vmatpush1.bf16.msra.mxu0 0
    %1598 = vmatprep.subr.bf16.mxu0 0
    %1599 = vmatpush1.bf16.msra.mxu0 0
    %1600 = vmatprep.subr.bf16.mxu0 0
    %1601 = vmatpush1.bf16.msra.mxu0 0
    %1602 = vmatprep.subr.bf16.mxu0 0
    %1603 = vmatpush1.bf16.msra.mxu0 0
    %1604 = vmatprep.subr.bf16.mxu0 0
    %1605 = vmatpush1.bf16.msra.mxu0 0
    %1606 = vmatprep.subr.bf16.mxu0 0
    %1607 = vmatpush1.bf16.msra.mxu0 0
    %1608 = vmatprep.subr.bf16.mxu0 0
    %1609 = vmatpush1.bf16.msra.mxu0 0
    %1610 = vmatprep.subr.bf16.mxu0 0
    %1611 = vmatpush1.bf16.msra.mxu0 0
    %1612 = vmatprep.subr.bf16.mxu0 0
    %1613 = vmatpush1.bf16.msra.mxu0 0
    %1614 = vmatprep.subr.bf16.mxu0 0
    %1615 = vmatpush1.bf16.msra.mxu0 0
    %1616 = vmatprep.mubr.bf16.mxu0 0
    %1617 = vmatmul.mubr.bf16.gmra.mrb[0].mxu0 %v1582
    %v1618 = vpop.f32.mrb[0].mxu0
    %v1619 = vadd.f32 0.0, %v1618
    %v1620 = vpop.f32.mrb[0].mxu0
    %v1621 = vpop.f32.mrb[0].mxu0
    %v1622 = vadd.f32 0.0, %v1621
    %v1623 = vpop.f32.mrb[0].mxu0
    %1624 = vdwg.mxu0
    %v1627 = vunpack.c.l.b16 %v1121
    %v1628 = vunpack.c.l.b16 %v1122
    %v1629 = vpack.c.b16 %v1628, %v1627
    %v1632 = vsel %vm182, %v1349, 0
    %1634 = vmatprep.subr.bf16.mxu0 0
    %1635 = vmatpush1.bf16.msra.mxu0 %v1629
    %1636 = vmatprep.subr.bf16.mxu0 0
    %1637 = vmatpush1.bf16.msra.mxu0 0
    %1638 = vmatprep.subr.bf16.mxu0 0
    %1639 = vmatpush1.bf16.msra.mxu0 0
    %1640 = vmatprep.subr.bf16.mxu0 0
    %1641 = vmatpush1.bf16.msra.mxu0 0
    %1642 = vmatprep.subr.bf16.mxu0 0
    %1643 = vmatpush1.bf16.msra.mxu0 0
    %1644 = vmatprep.subr.bf16.mxu0 0
    %1645 = vmatpush1.bf16.msra.mxu0 0
    %1646 = vmatprep.subr.bf16.mxu0 0
    %1647 = vmatpush1.bf16.msra.mxu0 0
    %1648 = vmatprep.subr.bf16.mxu0 0
    %1649 = vmatpush1.bf16.msra.mxu0 0
    %1650 = vmatprep.subr.bf16.mxu0 0
    %1651 = vmatpush1.bf16.msra.mxu0 0
    %1652 = vmatprep.subr.bf16.mxu0 0
    %1653 = vmatpush1.bf16.msra.mxu0 0
    %1654 = vmatprep.subr.bf16.mxu0 0
    %1655 = vmatpush1.bf16.msra.mxu0 0
    %1656 = vmatprep.subr.bf16.mxu0 0
    %1657 = vmatpush1.bf16.msra.mxu0 0
    %1658 = vmatprep.subr.bf16.mxu0 0
    %1659 = vmatpush1.bf16.msra.mxu0 0
    %1660 = vmatprep.subr.bf16.mxu0 0
    %1661 = vmatpush1.bf16.msra.mxu0 0
    %1662 = vmatprep.subr.bf16.mxu0 0
    %1663 = vmatpush1.bf16.msra.mxu0 0
    %1664 = vmatprep.subr.bf16.mxu0 0
    %1665 = vmatpush1.bf16.msra.mxu0 0
    %1666 = vmatprep.mubr.bf16.mxu0 0
    %1667 = vmatmul.mubr.bf16.gmra.mrb[0].mxu0 %v1632
    %v1668 = vpop.f32.mrb[0].mxu0
    %v1669 = vadd.f32 %v1619, %v1668
    %v1670 = vpop.f32.mrb[0].mxu0
    %v1671 = vpop.f32.mrb[0].mxu0
    %v1672 = vadd.f32 %v1622, %v1671
    %v1673 = vpop.f32.mrb[0].mxu0
    %1674 = vdwg.mxu0
    %s1675 = scalar_lea.vmem %s7, 1
    %v1676 = vld [vmem:[%s1675] sm:$0x1]
    %v1678 = vlaneseq
    %v1679 = vshrl.u32 %v1678, 7
    %v1680 = vsub.s32 0, %v1679
    %v1681 = vrot.slane %v1676, %v1680
    %v1683 = vadd.f32 %v1669, %v1681
    %v1684 = vadd.f32 %v1672, %v1681
    %v1685 = vadd.f32 %v1048, %v1683
    %v1686 = vadd.f32 %v1049, %v1684
    %s1687 = scalar_lea.vmem %s8, 1
    %v1688 = vld [vmem:[%s1687] sm:$0x1]
    %s1689 = scalar_lea.vmem %s9, 1
    %v1690 = vld [vmem:[%s1689] sm:$0x1]
    %v1691 = vsel %vm59, %v1685, 0.0
    %1692 = vadd.xlane.f32.xlu0 %v1691
    %v1693 = vpop.xlane.xlu0 %1692
    %v1694 = vsel %vm59, %v1686, 0.0
    %1695 = vadd.xlane.f32.xlu0 %v1694
    %v1696 = vpop.xlane.xlu0 %1695
    %v1697 = vmul.f32 %v1693, %v66
    %v1698 = vmul.f32 %v1696, %v66
    %v1699 = vsub.f32 %v1685, %v1697
    %v1700 = vsub.f32 %v1686, %v1698
    %v1701 = vmul.f32 %v1699, %v1699
    %v1702 = vmul.f32 %v1700, %v1700
    %v1703 = vsel %vm59, %v1701, 0.0
    %1704 = vadd.xlane.f32.xlu0 %v1703
    %v1705 = vpop.xlane.xlu0 %1704
    %v1706 = vsel %vm59, %v1702, 0.0
    %1707 = vadd.xlane.f32.xlu0 %v1706
    %v1708 = vpop.xlane.xlu0 %1707
    %v1709 = vmul.f32 %v1705, %v66
    %v1710 = vmul.f32 %v1708, %v66
    %v1711 = vadd.f32 %v1709, 1e-12
    %v1712 = vadd.f32 %v1710, 1e-12
    %v1713 = vrsqrt.pop %v1711
    %v1714 = vrsqrt.pop %v1712
    %v1715 = vmul.f32 %v1699, %v1713
    %v1716 = vmul.f32 %v1700, %v1714
    %v1718 = vlaneseq
    %v1719 = vshrl.u32 %v1718, 7
    %v1720 = vsub.s32 0, %v1719
    %v1721 = vrot.slane %v1688, %v1720
    %v1723 = vmul.f32 %v1715, %v1721
    %v1724 = vmul.f32 %v1716, %v1721
    %v1726 = vlaneseq
    %v1727 = vshrl.u32 %v1726, 7
    %v1728 = vsub.s32 0, %v1727
    %v1729 = vrot.slane %v1690, %v1728
    %v1731 = vadd.f32 %v1723, %v1729
    %v1732 = vadd.f32 %v1724, %v1729
    %v1733 = vpack.c.bf16 %v1732, %v1731
    %s1734 = scalar_lea.vmem %s10, 16
    %v1735 = vld [vmem:[%s1734] sm:$0xf]
    %v1736 = vld [vmem:[%s1734 + $0x4] sm:$0xf]
    %v1737 = vld [vmem:[%s1734 + $0x8] sm:$0xf]
    %v1738 = vld [vmem:[%s1734 + $0xc] sm:$0xf]
    %s1739 = scalar_lea.vmem %s11, 1
    %v1740 = vld [vmem:[%s1739] sm:$0x1]
    %v1742 = vlaneseq
    %v1743 = vshrl.u32 %v1742, 7
    %v1744 = vsub.s32 0, %v1743
    %v1745 = vrot.slane %v1740, %v1744
    %v1751 = vunpack.c.l.b16 %v1735
    %v1752 = vunpack.c.l.b16 %v1736
    %v1753 = vunpack.c.l.b16 %v1737
    %v1754 = vunpack.c.l.b16 %v1738
    %v1755 = vpack.c.b16 %v1752, %v1751
    %v1756 = vpack.c.b16 %v1754, %v1753
    %v1760 = vsel %vm59, %v1733, 0
    %1762 = vmatprep.subr.bf16.mxu0 0
    %1763 = vmatpush1.bf16.msra.mxu0 %v1755
    %1764 = vmatprep.subr.bf16.mxu0 0
    %1765 = vmatpush1.bf16.msra.mxu0 %v1756
    %1766 = vmatprep.subr.bf16.mxu0 0
    %1767 = vmatpush1.bf16.msra.mxu0 0
    %1768 = vmatprep.subr.bf16.mxu0 0
    %1769 = vmatpush1.bf16.msra.mxu0 0
    %1770 = vmatprep.subr.bf16.mxu0 0
    %1771 = vmatpush1.bf16.msra.mxu0 0
    %1772 = vmatprep.subr.bf16.mxu0 0
    %1773 = vmatpush1.bf16.msra.mxu0 0
    %1774 = vmatprep.subr.bf16.mxu0 0
    %1775 = vmatpush1.bf16.msra.mxu0 0
    %1776 = vmatprep.subr.bf16.mxu0 0
    %1777 = vmatpush1.bf16.msra.mxu0 0
    %1778 = vmatprep.subr.bf16.mxu0 0
    %1779 = vmatpush1.bf16.msra.mxu0 0
    %1780 = vmatprep.subr.bf16.mxu0 0
    %1781 = vmatpush1.bf16.msra.mxu0 0
    %1782 = vmatprep.subr.bf16.mxu0 0
    %1783 = vmatpush1.bf16.msra.mxu0 0
    %1784 = vmatprep.subr.bf16.mxu0 0
    %1785 = vmatpush1.bf16.msra.mxu0 0
    %1786 = vmatprep.subr.bf16.mxu0 0
    %1787 = vmatpush1.bf16.msra.mxu0 0
    %1788 = vmatprep.subr.bf16.mxu0 0
    %1789 = vmatpush1.bf16.msra.mxu0 0
    %1790 = vmatprep.subr.bf16.mxu0 0
    %1791 = vmatpush1.bf16.msra.mxu0 0
    %1792 = vmatprep.subr.bf16.mxu0 0
    %1793 = vmatpush1.bf16.msra.mxu0 0
    %1794 = vmatprep.mubr.bf16.mxu0 0
    %1795 = vmatmul.mubr.bf16.gmra.mrb[0].mxu0 %v1760
    %v1796 = vpop.f32.mrb[0].mxu0
    %v1797 = vadd.f32 %v1745, %v1796
    %v1798 = vpop.f32.mrb[0].mxu0
    %v1799 = vpop.f32.mrb[0].mxu0
    %v1800 = vadd.f32 %v1745, %v1799
    %v1801 = vpop.f32.mrb[0].mxu0
    %1802 = vdwg.mxu0
    %v1803 = vmul.f32 %v1797, 0.5
    %v1804 = vmul.f32 %v1800, 0.5
    %v1805 = vmul.f32 %v1797, 0.70710677
    %v1806 = vmul.f32 %v1800, 0.70710677
    %v1807 = vand.u32 2147483647, %v1805
    %v1808 = vand.u32 2147483647, %v1806
    %v1809 = vmul.f32 %v1807, 0.3275911
    %v1810 = vmul.f32 %v1808, 0.3275911
    %v1811 = vadd.f32 %v1809, 1.0
    %v1812 = vadd.f32 %v1810, 1.0
    %v1813 = vrcp.pop %v1811
    %v1814 = vmul.f32 1.0, %v1813
    %v1815 = vrcp.pop %v1812
    %v1816 = vmul.f32 1.0, %v1815
    %v1817 = vmul.f32 %v1814, 1.0614054
    %v1818 = vmul.f32 %v1816, 1.0614054
    %v1819 = vadd.f32 %v1817, -1.4531521
    %v1820 = vadd.f32 %v1818, -1.4531521
    %v1821 = vmul.f32 %v1819, %v1814
    %v1822 = vmul.f32 %v1820, %v1816
    %v1823 = vadd.f32 %v1821, 1.4214138
    %v1824 = vadd.f32 %v1822, 1.4214138
    %v1825 = vmul.f32 %v1823, %v1814
    %v1826 = vmul.f32 %v1824, %v1816
    %v1827 = vadd.f32 %v1825, -0.28449672
    %v1828 = vadd.f32 %v1826, -0.28449672
    %v1829 = vmul.f32 %v1827, %v1814
    %v1830 = vmul.f32 %v1828, %v1816
    %v1831 = vadd.f32 %v1829, 0.2548296
    %v1832 = vadd.f32 %v1830, 0.2548296
    %v1833 = vmul.f32 %v1831, %v1814
    %v1834 = vmul.f32 %v1832, %v1816
    %v1835 = vmul.f32 %v1807, %v1807
    %v1836 = vmul.f32 %v1808, %v1808
    %v1837 = vsub.f32 0.0, %v1835
    %v1838 = vsub.f32 0.0, %v1836
    %v1839 = vmul.f32 %v1837, 1.442695
    %v1840 = vpow.pop %v1839
    %v1841 = vmul.f32 %v1838, 1.442695
    %v1842 = vpow.pop %v1841
    %v1843 = vmul.f32 %v1833, %v1840
    %v1844 = vmul.f32 %v1834, %v1842
    %v1845 = vsub.f32 1.0, %v1843
    %v1846 = vsub.f32 1.0, %v1844
    %vm1847 = vcmp.ge.f32.partialorder %v1805, 0.0
    %vm1848 = vcmp.ge.f32.partialorder %v1806, 0.0
    %v1849 = vsub.f32 0.0, %v1845
    %v1850 = vsub.f32 0.0, %v1846
    %v1851 = vsel %vm1847, %v1845, %v1849
    %v1852 = vsel %vm1848, %v1846, %v1850
    %v1853 = vadd.f32 %v1851, 1.0
    %v1854 = vadd.f32 %v1852, 1.0
    %v1855 = vmul.f32 %v1803, %v1853
    %v1856 = vmul.f32 %v1804, %v1854
    %v1857 = vpack.c.bf16 %v1856, %v1855
    %s1858 = scalar_lea.vmem %s12, 32
    %v1859 = vld [vmem:[%s1858] sm:$0xf]
    %v1860 = vld [vmem:[%s1858 + $0x4] sm:$0xf]
    %v1861 = vld [vmem:[%s1858 + $0x8] sm:$0xf]
    %v1862 = vld [vmem:[%s1858 + $0xc] sm:$0xf]
    %v1863 = vld [vmem:[%s1858 + $0x10] sm:$0xf]
    %v1864 = vld [vmem:[%s1858 + $0x14] sm:$0xf]
    %v1865 = vld [vmem:[%s1858 + $0x18] sm:$0xf]
    %v1866 = vld [vmem:[%s1858 + $0x1c] sm:$0xf]
    %s1867 = scalar_lea.vmem %s13, 1
    %v1868 = vld [vmem:[%s1867] sm:$0x1]
    %v1870 = vlaneseq
    %v1871 = vshrl.u32 %v1870, 7
    %v1872 = vsub.s32 0, %v1871
    %v1873 = vrot.slane %v1868, %v1872
    %v1883 = vunpack.c.l.b16 %v1859
    %v1884 = vunpack.c.l.b16 %v1860
    %v1885 = vunpack.c.l.b16 %v1861
    %v1886 = vunpack.c.l.b16 %v1862
    %v1887 = vunpack.c.l.b16 %v1863
    %v1888 = vunpack.c.l.b16 %v1864
    %v1889 = vunpack.c.l.b16 %v1865
    %v1890 = vunpack.c.l.b16 %v1866
    %v1891 = vpack.c.b16 %v1884, %v1883
    %v1892 = vpack.c.b16 %v1886, %v1885
    %v1893 = vpack.c.b16 %v1888, %v1887
    %v1894 = vpack.c.b16 %v1890, %v1889
    %v1900 = vsel %vm959, %v1857, 0
    %1902 = vmatprep.subr.bf16.mxu0 0
    %1903 = vmatpush1.bf16.msra.mxu0 %v1891
    %1904 = vmatprep.subr.bf16.mxu0 0
    %1905 = vmatpush1.bf16.msra.mxu0 %v1892
    %1906 = vmatprep.subr.bf16.mxu0 0
    %1907 = vmatpush1.bf16.msra.mxu0 %v1893
    %1908 = vmatprep.subr.bf16.mxu0 0
    %1909 = vmatpush1.bf16.msra.mxu0 %v1894
    %1910 = vmatprep.subr.bf16.mxu0 0
    %1911 = vmatpush1.bf16.msra.mxu0 0
    %1912 = vmatprep.subr.bf16.mxu0 0
    %1913 = vmatpush1.bf16.msra.mxu0 0
    %1914 = vmatprep.subr.bf16.mxu0 0
    %1915 = vmatpush1.bf16.msra.mxu0 0
    %1916 = vmatprep.subr.bf16.mxu0 0
    %1917 = vmatpush1.bf16.msra.mxu0 0
    %1918 = vmatprep.subr.bf16.mxu0 0
    %1919 = vmatpush1.bf16.msra.mxu0 0
    %1920 = vmatprep.subr.bf16.mxu0 0
    %1921 = vmatpush1.bf16.msra.mxu0 0
    %1922 = vmatprep.subr.bf16.mxu0 0
    %1923 = vmatpush1.bf16.msra.mxu0 0
    %1924 = vmatprep.subr.bf16.mxu0 0
    %1925 = vmatpush1.bf16.msra.mxu0 0
    %1926 = vmatprep.subr.bf16.mxu0 0
    %1927 = vmatpush1.bf16.msra.mxu0 0
    %1928 = vmatprep.subr.bf16.mxu0 0
    %1929 = vmatpush1.bf16.msra.mxu0 0
    %1930 = vmatprep.subr.bf16.mxu0 0
    %1931 = vmatpush1.bf16.msra.mxu0 0
    %1932 = vmatprep.subr.bf16.mxu0 0
    %1933 = vmatpush1.bf16.msra.mxu0 0
    %1934 = vmatprep.mubr.bf16.mxu0 0
    %1935 = vmatmul.mubr.bf16.gmra.mrb[0].mxu0 %v1900
    %v1936 = vpop.f32.mrb[0].mxu0
    %v1937 = vadd.f32 %v1873, %v1936
    %v1938 = vpop.f32.mrb[0].mxu0
    %v1939 = vpop.f32.mrb[0].mxu0
    %v1940 = vadd.f32 %v1873, %v1939
    %v1941 = vpop.f32.mrb[0].mxu0
    %1942 = vdwg.mxu0
    %v1943 = vadd.f32 %v1731, %v1937
    %v1944 = vadd.f32 %v1732, %v1940
    %s1945 = scalar_lea.vmem %s14, 1
    %v1946 = vld [vmem:[%s1945] sm:$0x1]
    %s1947 = scalar_lea.vmem %s15, 1
    %v1948 = vld [vmem:[%s1947] sm:$0x1]
    %v1949 = vsel %vm59, %v1943, 0.0
    %1950 = vadd.xlane.f32.xlu0 %v1949
    %v1951 = vpop.xlane.xlu0 %1950
    %v1952 = vsel %vm59, %v1944, 0.0
    %1953 = vadd.xlane.f32.xlu0 %v1952
    %v1954 = vpop.xlane.xlu0 %1953
    %v1955 = vmul.f32 %v1951, %v66
    %v1956 = vmul.f32 %v1954, %v66
    %v1957 = vsub.f32 %v1943, %v1955
    %v1958 = vsub.f32 %v1944, %v1956
    %v1959 = vmul.f32 %v1957, %v1957
    %v1960 = vmul.f32 %v1958, %v1958
    %v1961 = vsel %vm59, %v1959, 0.0
    %1962 = vadd.xlane.f32.xlu0 %v1961
    %v1963 = vpop.xlane.xlu0 %1962
    %v1964 = vsel %vm59, %v1960, 0.0
    %1965 = vadd.xlane.f32.xlu0 %v1964
    %v1966 = vpop.xlane.xlu0 %1965
    %v1967 = vmul.f32 %v1963, %v66
    %v1968 = vmul.f32 %v1966, %v66
    %v1969 = vadd.f32 %v1967, 1e-12
    %v1970 = vadd.f32 %v1968, 1e-12
    %v1971 = vrsqrt.pop %v1969
    %v1972 = vrsqrt.pop %v1970
    %v1973 = vmul.f32 %v1957, %v1971
    %v1974 = vmul.f32 %v1958, %v1972
    %v1976 = vlaneseq
    %v1977 = vshrl.u32 %v1976, 7
    %v1978 = vsub.s32 0, %v1977
    %v1979 = vrot.slane %v1946, %v1978
    %v1981 = vmul.f32 %v1973, %v1979
    %v1982 = vmul.f32 %v1974, %v1979
    %v1984 = vlaneseq
    %v1985 = vshrl.u32 %v1984, 7
    %v1986 = vsub.s32 0, %v1985
    %v1987 = vrot.slane %v1948, %v1986
    %v1989 = vadd.f32 %v1981, %v1987
    %v1990 = vadd.f32 %v1982, %v1987
    %vm1991 = vcmask 253952
    %1992 = vst.msk [vmem:[#allocation2] sm:$0x1] %vm1991, %v1989
    %1993 = vst.msk [vmem:[#allocation2 + $0x1] sm:$0x1] %vm1991, %v1990
    // Predicated region
    $region66: #{bert_encode.1} parent=1 // pred_check
      _
    $region67: #{bert_encode.1} parent=1 // pred_check_branch
      %1995 = sbr.rel (0) target = $region69
    $region68: #{bert_encode.1} parent=1 // pred_region
      %s1997 = ssub.s32 32, 32
      %1998 = vsyncadd [#allocation3], %s1997
      %s2000 = sshll.u32 [#allocation2], 4
      %s2001 = int_to_ptr.vmem [resolvable:$true] %s2000
      %2003 = dma.vmem_to_hbm [thread:$0]  %s2001, 32, %s16, [#allocation3]
    $region69: #{bert_encode.1} parent=1 // pred_fallthru
      _
    // Predicated region
    $region70: #{bert_encode.1} parent=1 // pred_check
      _
    $region71: #{bert_encode.1} parent=1 // pred_check_branch
      %2005 = sbr.rel (0) target = $region73
    $region72: #{bert_encode.1} parent=1 // pred_region
      %2006 = dma.done [#allocation3], 32
    $region73: #{bert_encode.1} parent=1 // pred_fallthru
      _
    %2007 = vsyncpa [#allocation3], 1

</llo_original>
